<compile_context>
chip_gen: v6e
topology: v6e:2x2x1
jax: 0.10.0
libtpu: 0.0.40
codegen_flags: <defaults>
</compile_context>

<pallas_src>
import math
from functools import partial

import numpy as np
import jax
import jax.numpy as jnp
from jax.experimental import pallas as pl
from jax.experimental.pallas import tpu as pltpu  # noqa: F401  (TPU backend assumed)

# ----- small synthetic ViT config -----
BATCH = 2
CHANNELS = 3
IMG = 16
PATCH = 8
NUM_PATCHES = (IMG // PATCH) ** 2          # 4
SEQ = NUM_PATCHES + 1                      # 5  (CLS + patches)
HIDDEN = 32
NUM_HEADS = 4
HEAD_DIM = HIDDEN // NUM_HEADS             # 8
MLP = 64
LAYERS = 2
OUTPUT_DIM = 10                            # classifier out_dim (unused in forward)
LN_EPS = 1e-12                             # HF ViT layer_norm_eps default
TOK = BATCH * SEQ                          # batch-folded token rows (10)
ROWS = BATCH * NUM_HEADS * SEQ             # head-expanded rows (40)
PATCH_DIM = CHANNELS * PATCH * PATCH       # 192
OUT_ROWS = 16                              # 8 emb rows + 8 pooled(-padded) rows
SLAB_W = 128                               # parameter-slab lane width
F32 = jnp.float32


# ----------------- parameter-slab builder -----------------
class _SlabBuilder:
    """Packs many small f32 arrays into one (rows, 128) slab, 8-row aligned."""

    def __init__(self, width=SLAB_W):
        self.width = width
        self.layout = {}
        self.chunks = []
        self.rows = 0

    def add(self, name, arr):
        arr = np.asarray(jax.device_get(arr), np.float32)
        if arr.ndim == 1:
            arr = arr[None, :]
        r, c = arr.shape
        assert c <= self.width, (name, arr.shape)
        rp = ((r + 7) // 8) * 8
        buf = np.zeros((rp, self.width), np.float32)
        buf[:r, :c] = arr
        self.layout[name] = (self.rows, r, c)
        self.chunks.append(buf)
        self.rows += rp

    def finish(self):
        return np.concatenate(self.chunks, axis=0), dict(self.layout)


# ----------------- constant matrices for batched attention / assembly -----------------
def _attention_constants():
    r = np.arange(ROWS)
    b_of_r = r // (NUM_HEADS * SEQ)
    h_of_r = (r % (NUM_HEADS * SEQ)) // SEQ
    i_of_r = r % SEQ
    col_of_r = b_of_r * SEQ + i_of_r

    # (R, B*S): replicate token (b,i) into the row for every head h
    expand = (col_of_r[:, None] == np.arange(TOK)[None, :]).astype(np.float32)
    # (R, H): keep only head h's lane block
    head_mask = ((np.arange(HIDDEN)[None, :] // HEAD_DIM)
                 == h_of_r[:, None]).astype(np.float32)
    # (R, B*S): -1e9 on cross-batch keys
    batch_bias = np.where((np.arange(TOK)[None, :] // SEQ) == b_of_r[:, None],
                          0.0, -1e9).astype(np.float32)

    # (B*S, B*N): place patch token (b,i) at sequence row b*S + 1 + i (CLS row = 0)
    scatter_patch = np.zeros((TOK, BATCH * NUM_PATCHES), np.float32)
    for t in range(TOK):
        b, j = divmod(t, SEQ)
        if j >= 1:
            scatter_patch[t, b * NUM_PATCHES + (j - 1)] = 1.0

    # (OUT_ROWS, B*S): rows 0..B*N-1 gather patch tokens (embeddings),
    # rows B*N..B*N+B-1 gather CLS tokens, remaining rows are zero padding.
    gather_packed = np.zeros((OUT_ROWS, TOK), np.float32)
    for rr in range(BATCH * NUM_PATCHES):
        b, i = divmod(rr, NUM_PATCHES)
        gather_packed[rr, b * SEQ + 1 + i] = 1.0
    for b in range(BATCH):
        gather_packed[BATCH * NUM_PATCHES + b, b * SEQ] = 1.0

    return dict(expand=expand,
                expand_t=np.ascontiguousarray(expand.T),
                head_mask=head_mask,
                batch_bias=batch_bias,
                scatter_patch=scatter_patch,
                gather_packed=gather_packed)


# ----------------- parameter init (deterministic, synthetic) -----------------
def init_params(key):
    def nrm(k, shape, scale=0.02):
        return scale * jax.random.normal(k, shape, dtype=F32)

    keys = iter(jax.random.split(key, 32))
    layers = []
    for _ in range(LAYERS):
        layers.append(dict(
            ln1g=jnp.ones((HIDDEN,), F32), ln1b=jnp.zeros((HIDDEN,), F32),
            wq=nrm(next(keys), (HIDDEN, HIDDEN)), bq=jnp.zeros((HIDDEN,), F32),
            wk=nrm(next(keys), (HIDDEN, HIDDEN)), bk=jnp.zeros((HIDDEN,), F32),
            wv=nrm(next(keys), (HIDDEN, HIDDEN)), bv=jnp.zeros((HIDDEN,), F32),
            wo=nrm(next(keys), (HIDDEN, HIDDEN)), bo=jnp.zeros((HIDDEN,), F32),
            ln2g=jnp.ones((HIDDEN,), F32), ln2b=jnp.zeros((HIDDEN,), F32),
            w1=nrm(next(keys), (HIDDEN, MLP)), b1=jnp.zeros((MLP,), F32),
            w2=nrm(next(keys), (MLP, HIDDEN)), b2=jnp.zeros((HIDDEN,), F32),
        ))
    return dict(
        patch_w=nrm(next(keys), (PATCH_DIM, HIDDEN)),
        patch_b=jnp.zeros((HIDDEN,), F32),
        cls_token=nrm(next(keys), (HIDDEN,)),
        pos_emb=nrm(next(keys), (SEQ, HIDDEN)),
        ln_g=jnp.ones((HIDDEN,), F32), ln_b=jnp.zeros((HIDDEN,), F32),
        pool_w=nrm(next(keys), (HIDDEN, HIDDEN)), pool_b=jnp.zeros((HIDDEN,), F32),
        # classifier Linear from VIT_MODEL.__init__: present but never used in forward()
        classifier_w=nrm(next(keys), (HIDDEN, OUTPUT_DIM)),
        classifier_b=jnp.zeros((OUTPUT_DIM,), F32),
        layers=layers,
    )


def build_param_slab(params):
    """Pack all weights / constants into one contiguous (rows, 128) f32 slab."""
    consts = _attention_constants()
    sb = _SlabBuilder()

    pos = np.asarray(jax.device_get(params["pos_emb"]), np.float32)
    clsk = np.asarray(jax.device_get(params["cls_token"]), np.float32)
    pb = np.asarray(jax.device_get(params["patch_b"]), np.float32)

    # cls token + positional embedding + patch bias folded into one additive constant
    tok_bias = np.zeros((TOK, HIDDEN), np.float32)
    for b in range(BATCH):
        tok_bias[b * SEQ] = clsk + pos[0]
        tok_bias[b * SEQ + 1:(b + 1) * SEQ] = pb[None, :] + pos[1:]

    sb.add("patch_w", params["patch_w"])
    sb.add("tok_bias", tok_bias)

    scale = 1.0 / math.sqrt(HEAD_DIM)
    for l, lp in enumerate(params["layers"]):
        wq = np.asarray(jax.device_get(lp["wq"]), np.float32) * scale  # fold 1/sqrt(d)
        bq = np.asarray(jax.device_get(lp["bq"]), np.float32) * scale
        wk = np.asarray(jax.device_get(lp["wk"]), np.float32)
        wv = np.asarray(jax.device_get(lp["wv"]), np.float32)
        bk = np.asarray(jax.device_get(lp["bk"]), np.float32)
        bv = np.asarray(jax.device_get(lp["bv"]), np.float32)
        sb.add(f"ln1g{l}", lp["ln1g"])
        sb.add(f"ln1b{l}", lp["ln1b"])
        sb.add(f"wqkv{l}", np.concatenate([wq, wk, wv], axis=1))   # (H, 3H)
        sb.add(f"bqkv{l}", np.concatenate([bq, bk, bv], axis=0))   # (3H,)
        sb.add(f"wo{l}", lp["wo"])
        sb.add(f"bo{l}", lp["bo"])
        sb.add(f"ln2g{l}", lp["ln2g"])
        sb.add(f"ln2b{l}", lp["ln2b"])
        sb.add(f"w1{l}", lp["w1"])
        sb.add(f"b1{l}", lp["b1"])
        sb.add(f"w2{l}", lp["w2"])
        sb.add(f"b2{l}", lp["b2"])

    sb.add("lnfg", params["ln_g"])
    sb.add("lnfb", params["ln_b"])
    sb.add("pool_w", params["pool_w"])
    sb.add("pool_b", params["pool_b"])

    for name in ("expand", "expand_t", "head_mask", "batch_bias",
                 "scatter_patch", "gather_packed"):
        sb.add(name, consts[name])

    slab, layout = sb.finish()
    return jnp.asarray(slab), layout


# ----------------- fully-fused forward kernel -----------------
def make_vit_kernel(layout):
    inv_sqrt2 = 1.0 / math.sqrt(2.0)

    def kernel(patches_ref, slab_ref, out_ref):
        f32 = jnp.float32

        def P(name):
            off, r, c = layout[name]
            return slab_ref[off:off + r, 0:c]

        def layernorm(x, gname, bname):
            mu = jnp.mean(x, axis=-1, keepdims=True)
            var = jnp.mean((x - mu) * (x - mu), axis=-1, keepdims=True)
            return (x - mu) * jax.lax.rsqrt(var + LN_EPS) * P(gname) + P(bname)

        def gelu(x):
            # exact (erf) GELU, matching HF ViT default
            return 0.5 * x * (1.0 + jax.lax.erf(x * inv_sqrt2))

        # ---- patch embedding (== Conv2d k=s=PATCH on unfolded patches) ----
        patch_tok = jnp.dot(patches_ref[...], P("patch_w"),
                            preferred_element_type=f32)                   # (B*N, H)
        # ---- token assembly via constant scatter; cls/pos/patch_b folded in bias ----
        x = jnp.dot(P("scatter_patch"), patch_tok,
                    preferred_element_type=f32) + P("tok_bias")           # (B*S, H)

        expand = P("expand")          # (R, B*S)   row replication (b,h,i) <- (b,i)
        expand_t = P("expand_t")      # (B*S, R)   head recombination back to (b,i)
        head_mask = P("head_mask")    # (R, H)     keep only head h's lane block
        batch_bias = P("batch_bias")  # (R, B*S)   -1e9 on cross-batch keys

        for l in range(LAYERS):
            # ---- pre-LN multi-head self-attention (all batches/heads at once) ----
            h = layernorm(x, f"ln1g{l}", f"ln1b{l}")
            qkv = jnp.dot(h, P(f"wqkv{l}"),
                          preferred_element_type=f32) + P(f"bqkv{l}")     # (B*S, 3H)
            q = qkv[:, 0:HIDDEN]                 # pre-scaled by 1/sqrt(head_dim)
            k = qkv[:, HIDDEN:2 * HIDDEN]
            v = qkv[:, 2 * HIDDEN:3 * HIDDEN]

            qe = jnp.dot(expand, q, preferred_element_type=f32) * head_mask   # (R, H)
            s = jax.lax.dot_general(qe, k, (((1,), (1,)), ((), ())),
                                    preferred_element_type=f32) + batch_bias  # (R, B*S)
            s = s - jnp.max(s, axis=-1, keepdims=True)
            p = jnp.exp(s)
            p = p * pl.reciprocal(jnp.sum(p, axis=-1, keepdims=True), approx=True)
            ctx = jnp.dot(p, v, preferred_element_type=f32) * head_mask       # (R, H)
            ctx = jnp.dot(expand_t, ctx, preferred_element_type=f32)          # (B*S, H)

            x = x + jnp.dot(ctx, P(f"wo{l}"),
                            preferred_element_type=f32) + P(f"bo{l}")

            # ---- pre-LN MLP ----
            h2 = layernorm(x, f"ln2g{l}", f"ln2b{l}")
            m = gelu(jnp.dot(h2, P(f"w1{l}"),
                             preferred_element_type=f32) + P(f"b1{l}"))
            x = x + jnp.dot(m, P(f"w2{l}"),
                            preferred_element_type=f32) + P(f"b2{l}")

        # ---- final LN; constant-gather embeddings & CLS rows; pooler ----
        ln = layernorm(x, "lnfg", "lnfb")                                      # (B*S, H)
        packed = jnp.dot(P("gather_packed"), ln,
                         preferred_element_type=f32)                           # (16, H)
        emb = packed[0:BATCH * NUM_PATCHES, :]                                 # (8, H)
        cls_rows = packed[BATCH * NUM_PATCHES:OUT_ROWS, :]                     # (8, H)
        pooled = jnp.tanh(jnp.dot(cls_rows, P("pool_w"),
                                  preferred_element_type=f32) + P("pool_b"))   # (8, H)
        # two sublane-aligned stores into one (16, H) output buffer
        out_ref[0:BATCH * NUM_PATCHES, :] = emb
        out_ref[BATCH * NUM_PATCHES:OUT_ROWS, :] = pooled

    return kernel


# ----------------- wrapper (VIT_MODEL.forward) -----------------
def build_vit_forward(layout):
    vit_call = pl.pallas_call(
        make_vit_kernel(layout),
        out_shape=jax.ShapeDtypeStruct((OUT_ROWS, HIDDEN), F32),
    )

    @jax.jit
    def forward(image, slab):
        B, C, Hi, Wi = image.shape
        nh, nw = Hi // PATCH, Wi // PATCH
        # unfold NCHW image into non-overlapping patches flattened (c, ph, pw),
        # matching Conv2d(kernel=stride=PATCH) weight flattening (layout-only op).
        patches = image.reshape(B, C, nh, PATCH, nw, PATCH)
        patches = patches.transpose(0, 2, 4, 1, 3, 5).reshape(
            B * nh * nw, C * PATCH * PATCH)

        out = vit_call(patches, slab)                                      # (16, H)
        emb = out[:BATCH * NUM_PATCHES].reshape(B, NUM_PATCHES, HIDDEN)
        pooled = out[BATCH * NUM_PATCHES:BATCH * NUM_PATCHES + B]
        # VIT_MODEL.forward: embeddings = last_hidden[:, 1:, :], cls = pooler_output
        return {"embeddings": emb, "cls": pooled}

    return forward


if __name__ == "__main__":
    key = jax.random.PRNGKey(0)
    k_img, k_par = jax.random.split(key)
    image = jax.random.normal(k_img, (BATCH, CHANNELS, IMG, IMG), dtype=F32)

    params = init_params(k_par)
    slab, layout = build_param_slab(params)
    forward = build_vit_forward(layout)

    out = forward(image, slab)
    jax.block_until_ready(out)

    assert out["embeddings"].shape == (BATCH, NUM_PATCHES, HIDDEN)
    assert out["cls"].shape == (BATCH, HIDDEN)
    assert bool(jnp.all(jnp.isfinite(out["embeddings"])))
    assert bool(jnp.all(jnp.isfinite(out["cls"])))
    print("KERNEL_OK")
</pallas_src>

<mosaic_0001>
module attributes {stable_mosaic.version = 11 : i64} {
  func.func @kernel(%arg0: memref<8x192xf32, #tpu.memory_space<vmem>>, %arg1: memref<880x128xf32, #tpu.memory_space<vmem>>, %arg2: memref<16x32xf32, #tpu.memory_space<vmem>>) attributes {dimension_semantics = [], scalar_prefetch = 0 : i64, scratch_operands = 0 : i64, tpu.core_type = #tpu.core_type<tc>} {
    %c0 = arith.constant 0 : index
    %c0_0 = arith.constant 0 : index
    %0 = vector.load %arg0[%c0, %c0_0] : memref<8x192xf32, #tpu.memory_space<vmem>>, vector<8x192xf32>
    %c0_1 = arith.constant 0 : index
    %c0_2 = arith.constant 0 : index
    %1 = vector.load %arg1[%c0_1, %c0_2] : memref<880x128xf32, #tpu.memory_space<vmem>>, vector<192x32xf32>
    %cst = arith.constant dense<0.000000e+00> : vector<8x32xf32>
    %2 = tpu.matmul %0, %1, %cst {dimension_numbers = #tpu.dot_dimension_numbers<[1], [0], [0], [1], [0, 0, 1, 1], [], []>} : vector<8x192xf32>, vector<192x32xf32>, vector<8x32xf32> -> vector<8x32xf32>
    %c848 = arith.constant 848 : index
    %c0_3 = arith.constant 0 : index
    %3 = vector.load %arg1[%c848, %c0_3] : memref<880x128xf32, #tpu.memory_space<vmem>>, vector<10x8xf32>
    %cst_4 = arith.constant dense<0.000000e+00> : vector<10x32xf32>
    %4 = tpu.matmul %3, %2, %cst_4 {dimension_numbers = #tpu.dot_dimension_numbers<[1], [0], [0], [1], [0, 0, 1, 1], [], []>} : vector<10x8xf32>, vector<8x32xf32>, vector<10x32xf32> -> vector<10x32xf32>
    %c192 = arith.constant 192 : index
    %c0_5 = arith.constant 0 : index
    %5 = vector.load %arg1[%c192, %c0_5] : memref<880x128xf32, #tpu.memory_space<vmem>>, vector<10x32xf32>
    %6 = arith.addf %4, %5 : vector<10x32xf32>
    %c712 = arith.constant 712 : index
    %c0_6 = arith.constant 0 : index
    %7 = vector.load %arg1[%c712, %c0_6] : memref<880x128xf32, #tpu.memory_space<vmem>>, vector<40x10xf32>
    %c752 = arith.constant 752 : index
    %c0_7 = arith.constant 0 : index
    %8 = vector.load %arg1[%c752, %c0_7] : memref<880x128xf32, #tpu.memory_space<vmem>>, vector<10x40xf32>
    %c768 = arith.constant 768 : index
    %c0_8 = arith.constant 0 : index
    %9 = vector.load %arg1[%c768, %c0_8] : memref<880x128xf32, #tpu.memory_space<vmem>>, vector<40x32xf32>
    %c808 = arith.constant 808 : index
    %c0_9 = arith.constant 0 : index
    %10 = vector.load %arg1[%c808, %c0_9] : memref<880x128xf32, #tpu.memory_space<vmem>>, vector<40x10xf32>
    %cst_10 = arith.constant dense<0.000000e+00> : vector<10xf32>
    %11 = vector.multi_reduction <add>, %6, %cst_10 [1] : vector<10x32xf32> to vector<10xf32>
    %12 = vector.shape_cast %11 : vector<10xf32> to vector<10x1xf32>
    %cst_11 = arith.constant 3.200000e+01 : f32
    %13 = vector.broadcast %cst_11 : f32 to vector<10x1xf32>
    %14 = arith.divf %12, %13 : vector<10x1xf32>
    %15 = vector.broadcast %14 : vector<10x1xf32> to vector<10x32xf32>
    %16 = arith.subf %6, %15 : vector<10x32xf32>
    %17 = vector.broadcast %14 : vector<10x1xf32> to vector<10x32xf32>
    %18 = arith.subf %6, %17 : vector<10x32xf32>
    %19 = arith.mulf %16, %18 : vector<10x32xf32>
    %cst_12 = arith.constant dense<0.000000e+00> : vector<10xf32>
    %20 = vector.multi_reduction <add>, %19, %cst_12 [1] : vector<10x32xf32> to vector<10xf32>
    %21 = vector.shape_cast %20 : vector<10xf32> to vector<10x1xf32>
    %cst_13 = arith.constant 3.200000e+01 : f32
    %22 = vector.broadcast %cst_13 : f32 to vector<10x1xf32>
    %23 = arith.divf %21, %22 : vector<10x1xf32>
    %24 = vector.broadcast %14 : vector<10x1xf32> to vector<10x32xf32>
    %25 = arith.subf %6, %24 : vector<10x32xf32>
    %cst_14 = arith.constant 9.99999996E-13 : f32
    %26 = vector.broadcast %cst_14 : f32 to vector<10x1xf32>
    %27 = arith.addf %23, %26 : vector<10x1xf32>
    %28 = math.rsqrt %27 : vector<10x1xf32>
    %29 = vector.broadcast %28 : vector<10x1xf32> to vector<10x32xf32>
    %30 = arith.mulf %25, %29 : vector<10x32xf32>
    %c208 = arith.constant 208 : index
    %c0_15 = arith.constant 0 : index
    %31 = vector.load %arg1[%c208, %c0_15] : memref<880x128xf32, #tpu.memory_space<vmem>>, vector<1x32xf32>
    %32 = vector.broadcast %31 : vector<1x32xf32> to vector<10x32xf32>
    %33 = arith.mulf %30, %32 : vector<10x32xf32>
    %c216 = arith.constant 216 : index
    %c0_16 = arith.constant 0 : index
    %34 = vector.load %arg1[%c216, %c0_16] : memref<880x128xf32, #tpu.memory_space<vmem>>, vector<1x32xf32>
    %35 = vector.broadcast %34 : vector<1x32xf32> to vector<10x32xf32>
    %36 = arith.addf %33, %35 : vector<10x32xf32>
    %c224 = arith.constant 224 : index
    %c0_17 = arith.constant 0 : index
    %37 = vector.load %arg1[%c224, %c0_17] : memref<880x128xf32, #tpu.memory_space<vmem>>, vector<32x96xf32>
    %cst_18 = arith.constant dense<0.000000e+00> : vector<10x96xf32>
    %38 = tpu.matmul %36, %37, %cst_18 {dimension_numbers = #tpu.dot_dimension_numbers<[1], [0], [0], [1], [0, 0, 1, 1], [], []>} : vector<10x32xf32>, vector<32x96xf32>, vector<10x96xf32> -> vector<10x96xf32>
    %c256 = arith.constant 256 : index
    %c0_19 = arith.constant 0 : index
    %39 = vector.load %arg1[%c256, %c0_19] : memref<880x128xf32, #tpu.memory_space<vmem>>, vector<1x96xf32>
    %40 = vector.broadcast %39 : vector<1x96xf32> to vector<10x96xf32>
    %41 = arith.addf %38, %40 : vector<10x96xf32>
    %42 = vector.extract_strided_slice %41 {offsets = [0, 0], sizes = [10, 32], strides = [1, 1]} : vector<10x96xf32> to vector<10x32xf32>
    %43 = vector.extract_strided_slice %41 {offsets = [0, 32], sizes = [10, 32], strides = [1, 1]} : vector<10x96xf32> to vector<10x32xf32>
    %44 = vector.extract_strided_slice %41 {offsets = [0, 64], sizes = [10, 32], strides = [1, 1]} : vector<10x96xf32> to vector<10x32xf32>
    %cst_20 = arith.constant dense<0.000000e+00> : vector<40x32xf32>
    %45 = tpu.matmul %7, %42, %cst_20 {dimension_numbers = #tpu.dot_dimension_numbers<[1], [0], [0], [1], [0, 0, 1, 1], [], []>} : vector<40x10xf32>, vector<10x32xf32>, vector<40x32xf32> -> vector<40x32xf32>
    %46 = arith.mulf %45, %9 : vector<40x32xf32>
    %cst_21 = arith.constant dense<0.000000e+00> : vector<40x10xf32>
    %47 = tpu.matmul %46, %43, %cst_21 {dimension_numbers = #tpu.dot_dimension_numbers<[1], [1], [0], [0], [0, 0, 1, 0], [], []>} : vector<40x32xf32>, vector<10x32xf32>, vector<40x10xf32> -> vector<40x10xf32>
    %48 = arith.addf %47, %10 : vector<40x10xf32>
    %cst_22 = arith.constant dense<0xFF800000> : vector<40xf32>
    %49 = vector.multi_reduction <maximumf>, %48, %cst_22 [1] : vector<40x10xf32> to vector<40xf32>
    %50 = vector.shape_cast %49 : vector<40xf32> to vector<40x1xf32>
    %51 = vector.broadcast %50 : vector<40x1xf32> to vector<40x10xf32>
    %52 = arith.subf %48, %51 : vector<40x10xf32>
    %53 = math.exp %52 : vector<40x10xf32>
    %cst_23 = arith.constant dense<0.000000e+00> : vector<40xf32>
    %54 = vector.multi_reduction <add>, %53, %cst_23 [1] : vector<40x10xf32> to vector<40xf32>
    %55 = vector.shape_cast %54 : vector<40xf32> to vector<40x1xf32>
    %56 = tpu.reciprocal %55 {approx = true} : vector<40x1xf32> -> vector<40x1xf32>
    %57 = vector.broadcast %56 : vector<40x1xf32> to vector<40x10xf32>
    %58 = arith.mulf %53, %57 : vector<40x10xf32>
    %cst_24 = arith.constant dense<0.000000e+00> : vector<40x32xf32>
    %59 = tpu.matmul %58, %44, %cst_24 {dimension_numbers = #tpu.dot_dimension_numbers<[1], [0], [0], [1], [0, 0, 1, 1], [], []>} : vector<40x10xf32>, vector<10x32xf32>, vector<40x32xf32> -> vector<40x32xf32>
    %60 = arith.mulf %59, %9 : vector<40x32xf32>
    %cst_25 = arith.constant dense<0.000000e+00> : vector<10x32xf32>
    %61 = tpu.matmul %8, %60, %cst_25 {dimension_numbers = #tpu.dot_dimension_numbers<[1], [0], [0], [1], [0, 0, 1, 1], [], []>} : vector<10x40xf32>, vector<40x32xf32>, vector<10x32xf32> -> vector<10x32xf32>
    %c264 = arith.constant 264 : index
    %c0_26 = arith.constant 0 : index
    %62 = vector.load %arg1[%c264, %c0_26] : memref<880x128xf32, #tpu.memory_space<vmem>>, vector<32x32xf32>
    %cst_27 = arith.constant dense<0.000000e+00> : vector<10x32xf32>
    %63 = tpu.matmul %61, %62, %cst_27 {dimension_numbers = #tpu.dot_dimension_numbers<[1], [0], [0], [1], [0, 0, 1, 1], [], []>} : vector<10x32xf32>, vector<32x32xf32>, vector<10x32xf32> -> vector<10x32xf32>
    %64 = arith.addf %6, %63 : vector<10x32xf32>
    %c296 = arith.constant 296 : index
    %c0_28 = arith.constant 0 : index
    %65 = vector.load %arg1[%c296, %c0_28] : memref<880x128xf32, #tpu.memory_space<vmem>>, vector<1x32xf32>
    %66 = vector.broadcast %65 : vector<1x32xf32> to vector<10x32xf32>
    %67 = arith.addf %64, %66 : vector<10x32xf32>
    %cst_29 = arith.constant dense<0.000000e+00> : vector<10xf32>
    %68 = vector.multi_reduction <add>, %67, %cst_29 [1] : vector<10x32xf32> to vector<10xf32>
    %69 = vector.shape_cast %68 : vector<10xf32> to vector<10x1xf32>
    %cst_30 = arith.constant 3.200000e+01 : f32
    %70 = vector.broadcast %cst_30 : f32 to vector<10x1xf32>
    %71 = arith.divf %69, %70 : vector<10x1xf32>
    %72 = vector.broadcast %71 : vector<10x1xf32> to vector<10x32xf32>
    %73 = arith.subf %67, %72 : vector<10x32xf32>
    %74 = vector.broadcast %71 : vector<10x1xf32> to vector<10x32xf32>
    %75 = arith.subf %67, %74 : vector<10x32xf32>
    %76 = arith.mulf %73, %75 : vector<10x32xf32>
    %cst_31 = arith.constant dense<0.000000e+00> : vector<10xf32>
    %77 = vector.multi_reduction <add>, %76, %cst_31 [1] : vector<10x32xf32> to vector<10xf32>
    %78 = vector.shape_cast %77 : vector<10xf32> to vector<10x1xf32>
    %cst_32 = arith.constant 3.200000e+01 : f32
    %79 = vector.broadcast %cst_32 : f32 to vector<10x1xf32>
    %80 = arith.divf %78, %79 : vector<10x1xf32>
    %81 = vector.broadcast %71 : vector<10x1xf32> to vector<10x32xf32>
    %82 = arith.subf %67, %81 : vector<10x32xf32>
    %cst_33 = arith.constant 9.99999996E-13 : f32
    %83 = vector.broadcast %cst_33 : f32 to vector<10x1xf32>
    %84 = arith.addf %80, %83 : vector<10x1xf32>
    %85 = math.rsqrt %84 : vector<10x1xf32>
    %86 = vector.broadcast %85 : vector<10x1xf32> to vector<10x32xf32>
    %87 = arith.mulf %82, %86 : vector<10x32xf32>
    %c304 = arith.constant 304 : index
    %c0_34 = arith.constant 0 : index
    %88 = vector.load %arg1[%c304, %c0_34] : memref<880x128xf32, #tpu.memory_space<vmem>>, vector<1x32xf32>
    %89 = vector.broadcast %88 : vector<1x32xf32> to vector<10x32xf32>
    %90 = arith.mulf %87, %89 : vector<10x32xf32>
    %c312 = arith.constant 312 : index
    %c0_35 = arith.constant 0 : index
    %91 = vector.load %arg1[%c312, %c0_35] : memref<880x128xf32, #tpu.memory_space<vmem>>, vector<1x32xf32>
    %92 = vector.broadcast %91 : vector<1x32xf32> to vector<10x32xf32>
    %93 = arith.addf %90, %92 : vector<10x32xf32>
    %c320 = arith.constant 320 : index
    %c0_36 = arith.constant 0 : index
    %94 = vector.load %arg1[%c320, %c0_36] : memref<880x128xf32, #tpu.memory_space<vmem>>, vector<32x64xf32>
    %cst_37 = arith.constant dense<0.000000e+00> : vector<10x64xf32>
    %95 = tpu.matmul %93, %94, %cst_37 {dimension_numbers = #tpu.dot_dimension_numbers<[1], [0], [0], [1], [0, 0, 1, 1], [], []>} : vector<10x32xf32>, vector<32x64xf32>, vector<10x64xf32> -> vector<10x64xf32>
    %c352 = arith.constant 352 : index
    %c0_38 = arith.constant 0 : index
    %96 = vector.load %arg1[%c352, %c0_38] : memref<880x128xf32, #tpu.memory_space<vmem>>, vector<1x64xf32>
    %97 = vector.broadcast %96 : vector<1x64xf32> to vector<10x64xf32>
    %98 = arith.addf %95, %97 : vector<10x64xf32>
    %cst_39 = arith.constant 5.000000e-01 : f32
    %99 = vector.broadcast %cst_39 : f32 to vector<10x64xf32>
    %100 = arith.mulf %99, %98 : vector<10x64xf32>
    %cst_40 = arith.constant 0.707106769 : f32
    %101 = vector.broadcast %cst_40 : f32 to vector<10x64xf32>
    %102 = arith.mulf %98, %101 : vector<10x64xf32>
    %103 = math.erf %102 : vector<10x64xf32>
    %cst_41 = arith.constant 1.000000e+00 : f32
    %104 = vector.broadcast %cst_41 : f32 to vector<10x64xf32>
    %105 = arith.addf %104, %103 : vector<10x64xf32>
    %106 = arith.mulf %100, %105 : vector<10x64xf32>
    %c360 = arith.constant 360 : index
    %c0_42 = arith.constant 0 : index
    %107 = vector.load %arg1[%c360, %c0_42] : memref<880x128xf32, #tpu.memory_space<vmem>>, vector<64x32xf32>
    %cst_43 = arith.constant dense<0.000000e+00> : vector<10x32xf32>
    %108 = tpu.matmul %106, %107, %cst_43 {dimension_numbers = #tpu.dot_dimension_numbers<[1], [0], [0], [1], [0, 0, 1, 1], [], []>} : vector<10x64xf32>, vector<64x32xf32>, vector<10x32xf32> -> vector<10x32xf32>
    %109 = arith.addf %67, %108 : vector<10x32xf32>
    %c424 = arith.constant 424 : index
    %c0_44 = arith.constant 0 : index
    %110 = vector.load %arg1[%c424, %c0_44] : memref<880x128xf32, #tpu.memory_space<vmem>>, vector<1x32xf32>
    %111 = vector.broadcast %110 : vector<1x32xf32> to vector<10x32xf32>
    %112 = arith.addf %109, %111 : vector<10x32xf32>
    %cst_45 = arith.constant dense<0.000000e+00> : vector<10xf32>
    %113 = vector.multi_reduction <add>, %112, %cst_45 [1] : vector<10x32xf32> to vector<10xf32>
    %114 = vector.shape_cast %113 : vector<10xf32> to vector<10x1xf32>
    %cst_46 = arith.constant 3.200000e+01 : f32
    %115 = vector.broadcast %cst_46 : f32 to vector<10x1xf32>
    %116 = arith.divf %114, %115 : vector<10x1xf32>
    %117 = vector.broadcast %116 : vector<10x1xf32> to vector<10x32xf32>
    %118 = arith.subf %112, %117 : vector<10x32xf32>
    %119 = vector.broadcast %116 : vector<10x1xf32> to vector<10x32xf32>
    %120 = arith.subf %112, %119 : vector<10x32xf32>
    %121 = arith.mulf %118, %120 : vector<10x32xf32>
    %cst_47 = arith.constant dense<0.000000e+00> : vector<10xf32>
    %122 = vector.multi_reduction <add>, %121, %cst_47 [1] : vector<10x32xf32> to vector<10xf32>
    %123 = vector.shape_cast %122 : vector<10xf32> to vector<10x1xf32>
    %cst_48 = arith.constant 3.200000e+01 : f32
    %124 = vector.broadcast %cst_48 : f32 to vector<10x1xf32>
    %125 = arith.divf %123, %124 : vector<10x1xf32>
    %126 = vector.broadcast %116 : vector<10x1xf32> to vector<10x32xf32>
    %127 = arith.subf %112, %126 : vector<10x32xf32>
    %cst_49 = arith.constant 9.99999996E-13 : f32
    %128 = vector.broadcast %cst_49 : f32 to vector<10x1xf32>
    %129 = arith.addf %125, %128 : vector<10x1xf32>
    %130 = math.rsqrt %129 : vector<10x1xf32>
    %131 = vector.broadcast %130 : vector<10x1xf32> to vector<10x32xf32>
    %132 = arith.mulf %127, %131 : vector<10x32xf32>
    %c432 = arith.constant 432 : index
    %c0_50 = arith.constant 0 : index
    %133 = vector.load %arg1[%c432, %c0_50] : memref<880x128xf32, #tpu.memory_space<vmem>>, vector<1x32xf32>
    %134 = vector.broadcast %133 : vector<1x32xf32> to vector<10x32xf32>
    %135 = arith.mulf %132, %134 : vector<10x32xf32>
    %c440 = arith.constant 440 : index
    %c0_51 = arith.constant 0 : index
    %136 = vector.load %arg1[%c440, %c0_51] : memref<880x128xf32, #tpu.memory_space<vmem>>, vector<1x32xf32>
    %137 = vector.broadcast %136 : vector<1x32xf32> to vector<10x32xf32>
    %138 = arith.addf %135, %137 : vector<10x32xf32>
    %c448 = arith.constant 448 : index
    %c0_52 = arith.constant 0 : index
    %139 = vector.load %arg1[%c448, %c0_52] : memref<880x128xf32, #tpu.memory_space<vmem>>, vector<32x96xf32>
    %cst_53 = arith.constant dense<0.000000e+00> : vector<10x96xf32>
    %140 = tpu.matmul %138, %139, %cst_53 {dimension_numbers = #tpu.dot_dimension_numbers<[1], [0], [0], [1], [0, 0, 1, 1], [], []>} : vector<10x32xf32>, vector<32x96xf32>, vector<10x96xf32> -> vector<10x96xf32>
    %c480 = arith.constant 480 : index
    %c0_54 = arith.constant 0 : index
    %141 = vector.load %arg1[%c480, %c0_54] : memref<880x128xf32, #tpu.memory_space<vmem>>, vector<1x96xf32>
    %142 = vector.broadcast %141 : vector<1x96xf32> to vector<10x96xf32>
    %143 = arith.addf %140, %142 : vector<10x96xf32>
    %144 = vector.extract_strided_slice %143 {offsets = [0, 0], sizes = [10, 32], strides = [1, 1]} : vector<10x96xf32> to vector<10x32xf32>
    %145 = vector.extract_strided_slice %143 {offsets = [0, 32], sizes = [10, 32], strides = [1, 1]} : vector<10x96xf32> to vector<10x32xf32>
    %146 = vector.extract_strided_slice %143 {offsets = [0, 64], sizes = [10, 32], strides = [1, 1]} : vector<10x96xf32> to vector<10x32xf32>
    %cst_55 = arith.constant dense<0.000000e+00> : vector<40x32xf32>
    %147 = tpu.matmul %7, %144, %cst_55 {dimension_numbers = #tpu.dot_dimension_numbers<[1], [0], [0], [1], [0, 0, 1, 1], [], []>} : vector<40x10xf32>, vector<10x32xf32>, vector<40x32xf32> -> vector<40x32xf32>
    %148 = arith.mulf %147, %9 : vector<40x32xf32>
    %cst_56 = arith.constant dense<0.000000e+00> : vector<40x10xf32>
    %149 = tpu.matmul %148, %145, %cst_56 {dimension_numbers = #tpu.dot_dimension_numbers<[1], [1], [0], [0], [0, 0, 1, 0], [], []>} : vector<40x32xf32>, vector<10x32xf32>, vector<40x10xf32> -> vector<40x10xf32>
    %150 = arith.addf %149, %10 : vector<40x10xf32>
    %cst_57 = arith.constant dense<0xFF800000> : vector<40xf32>
    %151 = vector.multi_reduction <maximumf>, %150, %cst_57 [1] : vector<40x10xf32> to vector<40xf32>
    %152 = vector.shape_cast %151 : vector<40xf32> to vector<40x1xf32>
    %153 = vector.broadcast %152 : vector<40x1xf32> to vector<40x10xf32>
    %154 = arith.subf %150, %153 : vector<40x10xf32>
    %155 = math.exp %154 : vector<40x10xf32>
    %cst_58 = arith.constant dense<0.000000e+00> : vector<40xf32>
    %156 = vector.multi_reduction <add>, %155, %cst_58 [1] : vector<40x10xf32> to vector<40xf32>
    %157 = vector.shape_cast %156 : vector<40xf32> to vector<40x1xf32>
    %158 = tpu.reciprocal %157 {approx = true} : vector<40x1xf32> -> vector<40x1xf32>
    %159 = vector.broadcast %158 : vector<40x1xf32> to vector<40x10xf32>
    %160 = arith.mulf %155, %159 : vector<40x10xf32>
    %cst_59 = arith.constant dense<0.000000e+00> : vector<40x32xf32>
    %161 = tpu.matmul %160, %146, %cst_59 {dimension_numbers = #tpu.dot_dimension_numbers<[1], [0], [0], [1], [0, 0, 1, 1], [], []>} : vector<40x10xf32>, vector<10x32xf32>, vector<40x32xf32> -> vector<40x32xf32>
    %162 = arith.mulf %161, %9 : vector<40x32xf32>
    %cst_60 = arith.constant dense<0.000000e+00> : vector<10x32xf32>
    %163 = tpu.matmul %8, %162, %cst_60 {dimension_numbers = #tpu.dot_dimension_numbers<[1], [0], [0], [1], [0, 0, 1, 1], [], []>} : vector<10x40xf32>, vector<40x32xf32>, vector<10x32xf32> -> vector<10x32xf32>
    %c488 = arith.constant 488 : index
    %c0_61 = arith.constant 0 : index
    %164 = vector.load %arg1[%c488, %c0_61] : memref<880x128xf32, #tpu.memory_space<vmem>>, vector<32x32xf32>
    %cst_62 = arith.constant dense<0.000000e+00> : vector<10x32xf32>
    %165 = tpu.matmul %163, %164, %cst_62 {dimension_numbers = #tpu.dot_dimension_numbers<[1], [0], [0], [1], [0, 0, 1, 1], [], []>} : vector<10x32xf32>, vector<32x32xf32>, vector<10x32xf32> -> vector<10x32xf32>
    %166 = arith.addf %112, %165 : vector<10x32xf32>
    %c520 = arith.constant 520 : index
    %c0_63 = arith.constant 0 : index
    %167 = vector.load %arg1[%c520, %c0_63] : memref<880x128xf32, #tpu.memory_space<vmem>>, vector<1x32xf32>
    %168 = vector.broadcast %167 : vector<1x32xf32> to vector<10x32xf32>
    %169 = arith.addf %166, %168 : vector<10x32xf32>
    %cst_64 = arith.constant dense<0.000000e+00> : vector<10xf32>
    %170 = vector.multi_reduction <add>, %169, %cst_64 [1] : vector<10x32xf32> to vector<10xf32>
    %171 = vector.shape_cast %170 : vector<10xf32> to vector<10x1xf32>
    %cst_65 = arith.constant 3.200000e+01 : f32
    %172 = vector.broadcast %cst_65 : f32 to vector<10x1xf32>
    %173 = arith.divf %171, %172 : vector<10x1xf32>
    %174 = vector.broadcast %173 : vector<10x1xf32> to vector<10x32xf32>
    %175 = arith.subf %169, %174 : vector<10x32xf32>
    %176 = vector.broadcast %173 : vector<10x1xf32> to vector<10x32xf32>
    %177 = arith.subf %169, %176 : vector<10x32xf32>
    %178 = arith.mulf %175, %177 : vector<10x32xf32>
    %cst_66 = arith.constant dense<0.000000e+00> : vector<10xf32>
    %179 = vector.multi_reduction <add>, %178, %cst_66 [1] : vector<10x32xf32> to vector<10xf32>
    %180 = vector.shape_cast %179 : vector<10xf32> to vector<10x1xf32>
    %cst_67 = arith.constant 3.200000e+01 : f32
    %181 = vector.broadcast %cst_67 : f32 to vector<10x1xf32>
    %182 = arith.divf %180, %181 : vector<10x1xf32>
    %183 = vector.broadcast %173 : vector<10x1xf32> to vector<10x32xf32>
    %184 = arith.subf %169, %183 : vector<10x32xf32>
    %cst_68 = arith.constant 9.99999996E-13 : f32
    %185 = vector.broadcast %cst_68 : f32 to vector<10x1xf32>
    %186 = arith.addf %182, %185 : vector<10x1xf32>
    %187 = math.rsqrt %186 : vector<10x1xf32>
    %188 = vector.broadcast %187 : vector<10x1xf32> to vector<10x32xf32>
    %189 = arith.mulf %184, %188 : vector<10x32xf32>
    %c528 = arith.constant 528 : index
    %c0_69 = arith.constant 0 : index
    %190 = vector.load %arg1[%c528, %c0_69] : memref<880x128xf32, #tpu.memory_space<vmem>>, vector<1x32xf32>
    %191 = vector.broadcast %190 : vector<1x32xf32> to vector<10x32xf32>
    %192 = arith.mulf %189, %191 : vector<10x32xf32>
    %c536 = arith.constant 536 : index
    %c0_70 = arith.constant 0 : index
    %193 = vector.load %arg1[%c536, %c0_70] : memref<880x128xf32, #tpu.memory_space<vmem>>, vector<1x32xf32>
    %194 = vector.broadcast %193 : vector<1x32xf32> to vector<10x32xf32>
    %195 = arith.addf %192, %194 : vector<10x32xf32>
    %c544 = arith.constant 544 : index
    %c0_71 = arith.constant 0 : index
    %196 = vector.load %arg1[%c544, %c0_71] : memref<880x128xf32, #tpu.memory_space<vmem>>, vector<32x64xf32>
    %cst_72 = arith.constant dense<0.000000e+00> : vector<10x64xf32>
    %197 = tpu.matmul %195, %196, %cst_72 {dimension_numbers = #tpu.dot_dimension_numbers<[1], [0], [0], [1], [0, 0, 1, 1], [], []>} : vector<10x32xf32>, vector<32x64xf32>, vector<10x64xf32> -> vector<10x64xf32>
    %c576 = arith.constant 576 : index
    %c0_73 = arith.constant 0 : index
    %198 = vector.load %arg1[%c576, %c0_73] : memref<880x128xf32, #tpu.memory_space<vmem>>, vector<1x64xf32>
    %199 = vector.broadcast %198 : vector<1x64xf32> to vector<10x64xf32>
    %200 = arith.addf %197, %199 : vector<10x64xf32>
    %cst_74 = arith.constant 5.000000e-01 : f32
    %201 = vector.broadcast %cst_74 : f32 to vector<10x64xf32>
    %202 = arith.mulf %201, %200 : vector<10x64xf32>
    %cst_75 = arith.constant 0.707106769 : f32
    %203 = vector.broadcast %cst_75 : f32 to vector<10x64xf32>
    %204 = arith.mulf %200, %203 : vector<10x64xf32>
    %205 = math.erf %204 : vector<10x64xf32>
    %cst_76 = arith.constant 1.000000e+00 : f32
    %206 = vector.broadcast %cst_76 : f32 to vector<10x64xf32>
    %207 = arith.addf %206, %205 : vector<10x64xf32>
    %208 = arith.mulf %202, %207 : vector<10x64xf32>
    %c584 = arith.constant 584 : index
    %c0_77 = arith.constant 0 : index
    %209 = vector.load %arg1[%c584, %c0_77] : memref<880x128xf32, #tpu.memory_space<vmem>>, vector<64x32xf32>
    %cst_78 = arith.constant dense<0.000000e+00> : vector<10x32xf32>
    %210 = tpu.matmul %208, %209, %cst_78 {dimension_numbers = #tpu.dot_dimension_numbers<[1], [0], [0], [1], [0, 0, 1, 1], [], []>} : vector<10x64xf32>, vector<64x32xf32>, vector<10x32xf32> -> vector<10x32xf32>
    %211 = arith.addf %169, %210 : vector<10x32xf32>
    %c648 = arith.constant 648 : index
    %c0_79 = arith.constant 0 : index
    %212 = vector.load %arg1[%c648, %c0_79] : memref<880x128xf32, #tpu.memory_space<vmem>>, vector<1x32xf32>
    %213 = vector.broadcast %212 : vector<1x32xf32> to vector<10x32xf32>
    %214 = arith.addf %211, %213 : vector<10x32xf32>
    %cst_80 = arith.constant dense<0.000000e+00> : vector<10xf32>
    %215 = vector.multi_reduction <add>, %214, %cst_80 [1] : vector<10x32xf32> to vector<10xf32>
    %216 = vector.shape_cast %215 : vector<10xf32> to vector<10x1xf32>
    %cst_81 = arith.constant 3.200000e+01 : f32
    %217 = vector.broadcast %cst_81 : f32 to vector<10x1xf32>
    %218 = arith.divf %216, %217 : vector<10x1xf32>
    %219 = vector.broadcast %218 : vector<10x1xf32> to vector<10x32xf32>
    %220 = arith.subf %214, %219 : vector<10x32xf32>
    %221 = vector.broadcast %218 : vector<10x1xf32> to vector<10x32xf32>
    %222 = arith.subf %214, %221 : vector<10x32xf32>
    %223 = arith.mulf %220, %222 : vector<10x32xf32>
    %cst_82 = arith.constant dense<0.000000e+00> : vector<10xf32>
    %224 = vector.multi_reduction <add>, %223, %cst_82 [1] : vector<10x32xf32> to vector<10xf32>
    %225 = vector.shape_cast %224 : vector<10xf32> to vector<10x1xf32>
    %cst_83 = arith.constant 3.200000e+01 : f32
    %226 = vector.broadcast %cst_83 : f32 to vector<10x1xf32>
    %227 = arith.divf %225, %226 : vector<10x1xf32>
    %228 = vector.broadcast %218 : vector<10x1xf32> to vector<10x32xf32>
    %229 = arith.subf %214, %228 : vector<10x32xf32>
    %cst_84 = arith.constant 9.99999996E-13 : f32
    %230 = vector.broadcast %cst_84 : f32 to vector<10x1xf32>
    %231 = arith.addf %227, %230 : vector<10x1xf32>
    %232 = math.rsqrt %231 : vector<10x1xf32>
    %233 = vector.broadcast %232 : vector<10x1xf32> to vector<10x32xf32>
    %234 = arith.mulf %229, %233 : vector<10x32xf32>
    %c656 = arith.constant 656 : index
    %c0_85 = arith.constant 0 : index
    %235 = vector.load %arg1[%c656, %c0_85] : memref<880x128xf32, #tpu.memory_space<vmem>>, vector<1x32xf32>
    %236 = vector.broadcast %235 : vector<1x32xf32> to vector<10x32xf32>
    %237 = arith.mulf %234, %236 : vector<10x32xf32>
    %c664 = arith.constant 664 : index
    %c0_86 = arith.constant 0 : index
    %238 = vector.load %arg1[%c664, %c0_86] : memref<880x128xf32, #tpu.memory_space<vmem>>, vector<1x32xf32>
    %239 = vector.broadcast %238 : vector<1x32xf32> to vector<10x32xf32>
    %240 = arith.addf %237, %239 : vector<10x32xf32>
    %c864 = arith.constant 864 : index
    %c0_87 = arith.constant 0 : index
    %241 = vector.load %arg1[%c864, %c0_87] : memref<880x128xf32, #tpu.memory_space<vmem>>, vector<16x10xf32>
    %cst_88 = arith.constant dense<0.000000e+00> : vector<16x32xf32>
    %242 = tpu.matmul %241, %240, %cst_88 {dimension_numbers = #tpu.dot_dimension_numbers<[1], [0], [0], [1], [0, 0, 1, 1], [], []>} : vector<16x10xf32>, vector<10x32xf32>, vector<16x32xf32> -> vector<16x32xf32>
    %243 = vector.extract_strided_slice %242 {offsets = [0, 0], sizes = [8, 32], strides = [1, 1]} : vector<16x32xf32> to vector<8x32xf32>
    %244 = vector.extract_strided_slice %242 {offsets = [8, 0], sizes = [8, 32], strides = [1, 1]} : vector<16x32xf32> to vector<8x32xf32>
    %c672 = arith.constant 672 : index
    %c0_89 = arith.constant 0 : index
    %245 = vector.load %arg1[%c672, %c0_89] : memref<880x128xf32, #tpu.memory_space<vmem>>, vector<32x32xf32>
    %cst_90 = arith.constant dense<0.000000e+00> : vector<8x32xf32>
    %246 = tpu.matmul %244, %245, %cst_90 {dimension_numbers = #tpu.dot_dimension_numbers<[1], [0], [0], [1], [0, 0, 1, 1], [], []>} : vector<8x32xf32>, vector<32x32xf32>, vector<8x32xf32> -> vector<8x32xf32>
    %c704 = arith.constant 704 : index
    %c0_91 = arith.constant 0 : index
    %247 = vector.load %arg1[%c704, %c0_91] : memref<880x128xf32, #tpu.memory_space<vmem>>, vector<1x32xf32>
    %248 = vector.broadcast %247 : vector<1x32xf32> to vector<8x32xf32>
    %249 = arith.addf %246, %248 : vector<8x32xf32>
    %250 = math.tanh %249 : vector<8x32xf32>
    %c0_92 = arith.constant 0 : index
    %c0_93 = arith.constant 0 : index
    %251 = vector.load %arg2[%c0_92, %c0_93] : memref<16x32xf32, #tpu.memory_space<vmem>>, vector<8x32xf32>
    tpu.vector_store %arg2[%c0_92, %c0_93], %243 {strides = array<i32>} : memref<16x32xf32, #tpu.memory_space<vmem>>, vector<8x32xf32>,
    %c8 = arith.constant 8 : index
    %c0_94 = arith.constant 0 : index
    %252 = vector.load %arg2[%c8, %c0_94] : memref<16x32xf32, #tpu.memory_space<vmem>>, vector<8x32xf32>
    tpu.vector_store %arg2[%c8, %c0_94], %250 {strides = array<i32>} : memref<16x32xf32, #tpu.memory_space<vmem>>, vector<8x32xf32>,
    return
  }
}

</mosaic_0001>

<llo_original>
// kernel: forward.1
$region0: #{forward.1}
  #allocation0 [shape = 'u32[]', space=smem, size = 0x4, offset = 0x4, fixed_abs, tag = 'smem constant byte address 0x4 - core index']
  #allocation1 [shape = 'u32[144,128]{1,0:T(1,128)}', space=vmem, size = 0x12000, scoped, tag = 'internal scratch']
  %s0 = inlined_call_operand.vmem [shape: f32[8,192], index: 0, kind: input, shape index: {}]
  %s1 = inlined_call_operand.vmem [shape: f32[880,128], index: 1, kind: input, shape index: {}]
  %s2 = inlined_call_operand.vmem [shape: f32[16,32], index: 2, kind: output, shape index: {}]
  %s3 = sld [smem:[#allocation0]]
  $region18: #{forward.1} parent=0
    _
  %s5 = ssub.s32 1, %s3
  %s6 = scalar_select 0, %s5, %s3
  // Predicated region
  $region2: #{forward.1} parent=0 // pred_check
    _
  $region3: #{forward.1} parent=0 // pred_check_branch
    %8 = sbr.rel (0) target = $region5
  $region4: #{forward.1} parent=0 // pred_region
    _
  $region5: #{forward.1} parent=0 // pred_fallthru
    _
  // Predicated region
  $region6: #{forward.1} parent=0 // pred_check
    _
  $region7: #{forward.1} parent=0 // pred_check_branch
    %10 = sbr.rel (0) target = $region9
  $region8: #{forward.1} parent=0 // pred_region
    _
  $region9: #{forward.1} parent=0 // pred_fallthru
    _
  %v11 = vld [vmem:[%s0] sm:$0xff]
  %v12 = vld [vmem:[%s0 + $0x8] sm:$0xff]
  %v13 = vld [vmem:[%s1] sm:$0xff]
  %v14 = vld [vmem:[%s1 + $0x8] sm:$0xff]
  %v15 = vld [vmem:[%s1 + $0x10] sm:$0xff]
  %v16 = vld [vmem:[%s1 + $0x18] sm:$0xff]
  %v17 = vld [vmem:[%s1 + $0x20] sm:$0xff]
  %v18 = vld [vmem:[%s1 + $0x28] sm:$0xff]
  %v19 = vld [vmem:[%s1 + $0x30] sm:$0xff]
  %v20 = vld [vmem:[%s1 + $0x38] sm:$0xff]
  %v21 = vld [vmem:[%s1 + $0x40] sm:$0xff]
  %v22 = vld [vmem:[%s1 + $0x48] sm:$0xff]
  %v23 = vld [vmem:[%s1 + $0x50] sm:$0xff]
  %v24 = vld [vmem:[%s1 + $0x58] sm:$0xff]
  %v25 = vld [vmem:[%s1 + $0x60] sm:$0xff]
  %v26 = vld [vmem:[%s1 + $0x68] sm:$0xff]
  %v27 = vld [vmem:[%s1 + $0x70] sm:$0xff]
  %v28 = vld [vmem:[%s1 + $0x78] sm:$0xff]
  %v29 = vld [vmem:[%s1 + $0x80] sm:$0xff]
  %v30 = vld [vmem:[%s1 + $0x88] sm:$0xff]
  %v31 = vld [vmem:[%s1 + $0x90] sm:$0xff]
  %v32 = vld [vmem:[%s1 + $0x98] sm:$0xff]
  %v33 = vld [vmem:[%s1 + $0xa0] sm:$0xff]
  %v34 = vld [vmem:[%s1 + $0xa8] sm:$0xff]
  %v35 = vld [vmem:[%s1 + $0xb0] sm:$0xff]
  %v36 = vld [vmem:[%s1 + $0xb8] sm:$0xff]
  %vm37 = vcmask 523264
  %v39 = vsel %vm37, %v12, 0
  %41 = vmatprep.subr.mxu0 0.0
  %42 = vmatpush1.msra.mxu0 %v28
  %43 = vmatprep.subr.mxu0 0.0
  %44 = vmatpush1.msra.mxu0 %v27
  %45 = vmatprep.subr.mxu0 0.0
  %46 = vmatpush1.msra.mxu0 %v26
  %47 = vmatprep.subr.mxu0 0.0
  %48 = vmatpush1.msra.mxu0 %v25
  %49 = vmatprep.subr.mxu0 0.0
  %50 = vmatpush1.msra.mxu0 %v24
  %51 = vmatprep.subr.mxu0 0.0
  %52 = vmatpush1.msra.mxu0 %v23
  %53 = vmatprep.subr.mxu0 0.0
  %54 = vmatpush1.msra.mxu0 %v22
  %55 = vmatprep.subr.mxu0 0.0
  %56 = vmatpush1.msra.mxu0 %v21
  %57 = vmatprep.subr.mxu0 0.0
  %58 = vmatpush1.msra.mxu0 %v20
  %59 = vmatprep.subr.mxu0 0.0
  %60 = vmatpush1.msra.mxu0 %v19
  %61 = vmatprep.subr.mxu0 0.0
  %62 = vmatpush1.msra.mxu0 %v18
  %63 = vmatprep.subr.mxu0 0.0
  %64 = vmatpush1.msra.mxu0 %v17
  %65 = vmatprep.subr.mxu0 0.0
  %66 = vmatpush1.msra.mxu0 %v16
  %67 = vmatprep.subr.mxu0 0.0
  %68 = vmatpush1.msra.mxu0 %v15
  %69 = vmatprep.subr.mxu0 0.0
  %70 = vmatpush1.msra.mxu0 %v14
  %71 = vmatprep.subr.mxu0 0.0
  %72 = vmatpush1.msra.mxu0 %v13
  %73 = vmatprep.subr.mxu0 0.0
  %74 = vmatpush2.msra.mxu0 0.0
  %75 = vmatprep.subr.mxu0 0.0
  %76 = vmatpush2.msra.mxu0 0.0
  %77 = vmatprep.subr.mxu0 0.0
  %78 = vmatpush2.msra.mxu0 0.0
  %79 = vmatprep.subr.mxu0 0.0
  %80 = vmatpush2.msra.mxu0 0.0
  %81 = vmatprep.subr.mxu0 0.0
  %82 = vmatpush2.msra.mxu0 0.0
  %83 = vmatprep.subr.mxu0 0.0
  %84 = vmatpush2.msra.mxu0 0.0
  %85 = vmatprep.subr.mxu0 0.0
  %86 = vmatpush2.msra.mxu0 0.0
  %87 = vmatprep.subr.mxu0 0.0
  %88 = vmatpush2.msra.mxu0 0.0
  %89 = vmatprep.subr.mxu0 0.0
  %90 = vmatpush2.msra.mxu0 %v36
  %91 = vmatprep.subr.mxu0 0.0
  %92 = vmatpush2.msra.mxu0 %v35
  %93 = vmatprep.subr.mxu0 0.0
  %94 = vmatpush2.msra.mxu0 %v34
  %95 = vmatprep.subr.mxu0 0.0
  %96 = vmatpush2.msra.mxu0 %v33
  %97 = vmatprep.subr.mxu0 0.0
  %98 = vmatpush2.msra.mxu0 %v32
  %99 = vmatprep.subr.mxu0 0.0
  %100 = vmatpush2.msra.mxu0 %v31
  %101 = vmatprep.subr.mxu0 0.0
  %102 = vmatpush2.msra.mxu0 %v30
  %103 = vmatprep.subr.mxu0 0.0
  %104 = vmatpush2.msra.mxu0 %v29
  %105 = vmatprep.mubr.f32.mxu0 %v39
  %106 = vmatmul.mubr.f32.gmra.mxu0 %v11
  %v107 = vpop.f32.mrf.mxu0
  %v108 = vadd.f32 0.0, %v107
  %v109 = vpop.f32.mrf.mxu0
  %110 = vdwg.mxu0
  %v111 = vld [vmem:[%s1 + $0x350] sm:$0xff]
  %v112 = vld [vmem:[%s1 + $0x358] sm:$0x3]
  %v113 = vld [vmem:[%s1 + $0xc0] sm:$0xff]
  %v114 = vld [vmem:[%s1 + $0xc8] sm:$0x3]
  %vm115 = vcmask 64512
  %v117 = vsel %vm115, %v111, 0
  %v120 = vsel %vm115, %v112, 0
  %122 = vmatprep.subr.mxu0 0.0
  %123 = vmatpush1.msra.mxu0 0.0
  %124 = vmatprep.subr.mxu0 0.0
  %125 = vmatpush1.msra.mxu0 0.0
  %126 = vmatprep.subr.mxu0 0.0
  %127 = vmatpush1.msra.mxu0 0.0
  %128 = vmatprep.subr.mxu0 0.0
  %129 = vmatpush1.msra.mxu0 0.0
  %130 = vmatprep.subr.mxu0 0.0
  %131 = vmatpush1.msra.mxu0 0.0
  %132 = vmatprep.subr.mxu0 0.0
  %133 = vmatpush1.msra.mxu0 0.0
  %134 = vmatprep.subr.mxu0 0.0
  %135 = vmatpush1.msra.mxu0 0.0
  %136 = vmatprep.subr.mxu0 0.0
  %137 = vmatpush1.msra.mxu0 0.0
  %138 = vmatprep.subr.mxu0 0.0
  %139 = vmatpush1.msra.mxu0 0.0
  %140 = vmatprep.subr.mxu0 0.0
  %141 = vmatpush1.msra.mxu0 0.0
  %142 = vmatprep.subr.mxu0 0.0
  %143 = vmatpush1.msra.mxu0 0.0
  %144 = vmatprep.subr.mxu0 0.0
  %145 = vmatpush1.msra.mxu0 0.0
  %146 = vmatprep.subr.mxu0 0.0
  %147 = vmatpush1.msra.mxu0 0.0
  %148 = vmatprep.subr.mxu0 0.0
  %149 = vmatpush1.msra.mxu0 0.0
  %150 = vmatprep.subr.mxu0 0.0
  %151 = vmatpush1.msra.mxu0 0.0
  %152 = vmatprep.subr.mxu0 0.0
  %153 = vmatpush1.msra.mxu0 %v108
  %154 = vmatprep.subr.mxu0 0.0
  %155 = vmatpush2.msra.mxu0 0.0
  %156 = vmatprep.subr.mxu0 0.0
  %157 = vmatpush2.msra.mxu0 0.0
  %158 = vmatprep.subr.mxu0 0.0
  %159 = vmatpush2.msra.mxu0 0.0
  %160 = vmatprep.subr.mxu0 0.0
  %161 = vmatpush2.msra.mxu0 0.0
  %162 = vmatprep.subr.mxu0 0.0
  %163 = vmatpush2.msra.mxu0 0.0
  %164 = vmatprep.subr.mxu0 0.0
  %165 = vmatpush2.msra.mxu0 0.0
  %166 = vmatprep.subr.mxu0 0.0
  %167 = vmatpush2.msra.mxu0 0.0
  %168 = vmatprep.subr.mxu0 0.0
  %169 = vmatpush2.msra.mxu0 0.0
  %170 = vmatprep.subr.mxu0 0.0
  %171 = vmatpush2.msra.mxu0 0.0
  %172 = vmatprep.subr.mxu0 0.0
  %173 = vmatpush2.msra.mxu0 0.0
  %174 = vmatprep.subr.mxu0 0.0
  %175 = vmatpush2.msra.mxu0 0.0
  %176 = vmatprep.subr.mxu0 0.0
  %177 = vmatpush2.msra.mxu0 0.0
  %178 = vmatprep.subr.mxu0 0.0
  %179 = vmatpush2.msra.mxu0 0.0
  %180 = vmatprep.subr.mxu0 0.0
  %181 = vmatpush2.msra.mxu0 0.0
  %182 = vmatprep.subr.mxu0 0.0
  %183 = vmatpush2.msra.mxu0 0.0
  %184 = vmatprep.subr.mxu0 0.0
  %185 = vmatpush2.msra.mxu0 0.0
  %186 = vmatprep.mubr.f32.mxu0 0.0
  %187 = vmatmul.mubr.f32.gmra.mxu0 %v117
  %v188 = vpop.f32.mrf.mxu0
  %v189 = vadd.f32 %v113, %v188
  %v190 = vpop.f32.mrf.mxu0
  %191 = vmatprep.mubr.f32.mxu0 0.0
  %192 = vmatmul.mubr.f32.gmra.mxu0 %v120
  %v193 = vpop.f32.mrf.mxu0
  %v194 = vadd.f32 %v114, %v193
  %v195 = vpop.f32.mrf.mxu0
  %196 = vdwg.mxu0
  %v197 = vld [vmem:[%s1 + $0x2c8] sm:$0xff]
  %v198 = vld [vmem:[%s1 + $0x2d0] sm:$0xff]
  %v199 = vld [vmem:[%s1 + $0x2d8] sm:$0xff]
  %v200 = vld [vmem:[%s1 + $0x2e0] sm:$0xff]
  %v201 = vld [vmem:[%s1 + $0x2e8] sm:$0xff]
  %v202 = vld [vmem:[%s1 + $0x2f0] sm:$0xff]
  %v203 = vld [vmem:[%s1 + $0x2f8] sm:$0x3]
  %v204 = vld [vmem:[%s1 + $0x300] sm:$0xff]
  %v205 = vld [vmem:[%s1 + $0x308] sm:$0xff]
  %v206 = vld [vmem:[%s1 + $0x310] sm:$0xff]
  %v207 = vld [vmem:[%s1 + $0x318] sm:$0xff]
  %v208 = vld [vmem:[%s1 + $0x320] sm:$0xff]
  %v209 = vld [vmem:[%s1 + $0x328] sm:$0xff]
  %v210 = vld [vmem:[%s1 + $0x330] sm:$0xff]
  %v211 = vld [vmem:[%s1 + $0x338] sm:$0xff]
  %v212 = vld [vmem:[%s1 + $0x340] sm:$0xff]
  %v213 = vld [vmem:[%s1 + $0x348] sm:$0xff]
  %vm214 = vcmask 261120
  %v215 = vsel %vm214, %v189, 0.0
  %216 = vadd.xlane.f32.xlu0 %v215
  %v217 = vpop.xlane.xlu0 %216
  %vm218 = vcmask 254976
  %v219 = vsel %vm218, %v194, 0.0
  %220 = vadd.xlane.f32.xlu0 %v219
  %v221 = vpop.xlane.xlu0 %220
  %v222 = vrcp.pop 32.0
  %v223 = vmul.f32 %v217, %v222
  %v224 = vmul.f32 %v221, %v222
  %v225 = vsub.f32 %v189, %v223
  %v226 = vsub.f32 %v194, %v224
  %v227 = vmul.f32 %v225, %v225
  %v228 = vmul.f32 %v226, %v226
  %v229 = vsel %vm214, %v227, 0.0
  %230 = vadd.xlane.f32.xlu0 %v229
  %v231 = vpop.xlane.xlu0 %230
  %v232 = vsel %vm218, %v228, 0.0
  %233 = vadd.xlane.f32.xlu0 %v232
  %v234 = vpop.xlane.xlu0 %233
  %v235 = vmul.f32 %v231, %v222
  %v236 = vmul.f32 %v234, %v222
  %v237 = vadd.f32 %v235, 1e-12
  %v238 = vadd.f32 %v236, 1e-12
  %v239 = vrsqrt.pop %v237
  %v240 = vrsqrt.pop %v238
  %v241 = vmul.f32 %v225, %v239
  %v242 = vmul.f32 %v226, %v240
  %v243 = vld [vmem:[%s1 + $0xd0] sm:$0x1]
  %v244 = vlaneseq
  %v245 = vshrl.u32 %v244, 7
  %v246 = vsub.s32 0, %v245
  %v247 = vrot.slane %v243, %v246
  %v248 = vmul.f32 %v241, %v247
  %v249 = vmul.f32 %v242, %v247
  %v250 = vld [vmem:[%s1 + $0xd8] sm:$0x1]
  %v251 = vlaneseq
  %v252 = vshrl.u32 %v251, 7
  %v253 = vsub.s32 0, %v252
  %v254 = vrot.slane %v250, %v253
  %v255 = vadd.f32 %v248, %v254
  %v256 = vadd.f32 %v249, %v254
  %v257 = vld [vmem:[%s1 + $0xe0] sm:$0xff]
  %v258 = vld [vmem:[%s1 + $0xe8] sm:$0xff]
  %v259 = vld [vmem:[%s1 + $0xf0] sm:$0xff]
  %v260 = vld [vmem:[%s1 + $0xf8] sm:$0xff]
  %v261 = vld [vmem:[%s1 + $0x100] sm:$0x1]
  %v262 = vlaneseq
  %v263 = vshrl.u32 %v262, 7
  %v264 = vsub.s32 0, %v263
  %v265 = vrot.slane %v261, %v264
  %v267 = vsel %vm214, %v255, 0
  %v270 = vsel %vm214, %v256, 0
  %272 = vmatprep.subr.mxu0 0.0
  %273 = vmatpush1.msra.mxu0 0.0
  %274 = vmatprep.subr.mxu0 0.0
  %275 = vmatpush1.msra.mxu0 0.0
  %276 = vmatprep.subr.mxu0 0.0
  %277 = vmatpush1.msra.mxu0 0.0
  %278 = vmatprep.subr.mxu0 0.0
  %279 = vmatpush1.msra.mxu0 0.0
  %280 = vmatprep.subr.mxu0 0.0
  %281 = vmatpush1.msra.mxu0 0.0
  %282 = vmatprep.subr.mxu0 0.0
  %283 = vmatpush1.msra.mxu0 0.0
  %284 = vmatprep.subr.mxu0 0.0
  %285 = vmatpush1.msra.mxu0 0.0
  %286 = vmatprep.subr.mxu0 0.0
  %287 = vmatpush1.msra.mxu0 0.0
  %288 = vmatprep.subr.mxu0 0.0
  %289 = vmatpush1.msra.mxu0 0.0
  %290 = vmatprep.subr.mxu0 0.0
  %291 = vmatpush1.msra.mxu0 0.0
  %292 = vmatprep.subr.mxu0 0.0
  %293 = vmatpush1.msra.mxu0 0.0
  %294 = vmatprep.subr.mxu0 0.0
  %295 = vmatpush1.msra.mxu0 0.0
  %296 = vmatprep.subr.mxu0 0.0
  %297 = vmatpush1.msra.mxu0 %v260
  %298 = vmatprep.subr.mxu0 0.0
  %299 = vmatpush1.msra.mxu0 %v259
  %300 = vmatprep.subr.mxu0 0.0
  %301 = vmatpush1.msra.mxu0 %v258
  %302 = vmatprep.subr.mxu0 0.0
  %303 = vmatpush1.msra.mxu0 %v257
  %304 = vmatprep.subr.mxu0 0.0
  %305 = vmatpush2.msra.mxu0 0.0
  %306 = vmatprep.subr.mxu0 0.0
  %307 = vmatpush2.msra.mxu0 0.0
  %308 = vmatprep.subr.mxu0 0.0
  %309 = vmatpush2.msra.mxu0 0.0
  %310 = vmatprep.subr.mxu0 0.0
  %311 = vmatpush2.msra.mxu0 0.0
  %312 = vmatprep.subr.mxu0 0.0
  %313 = vmatpush2.msra.mxu0 0.0
  %314 = vmatprep.subr.mxu0 0.0
  %315 = vmatpush2.msra.mxu0 0.0
  %316 = vmatprep.subr.mxu0 0.0
  %317 = vmatpush2.msra.mxu0 0.0
  %318 = vmatprep.subr.mxu0 0.0
  %319 = vmatpush2.msra.mxu0 0.0
  %320 = vmatprep.subr.mxu0 0.0
  %321 = vmatpush2.msra.mxu0 0.0
  %322 = vmatprep.subr.mxu0 0.0
  %323 = vmatpush2.msra.mxu0 0.0
  %324 = vmatprep.subr.mxu0 0.0
  %325 = vmatpush2.msra.mxu0 0.0
  %326 = vmatprep.subr.mxu0 0.0
  %327 = vmatpush2.msra.mxu0 0.0
  %328 = vmatprep.subr.mxu0 0.0
  %329 = vmatpush2.msra.mxu0 0.0
  %330 = vmatprep.subr.mxu0 0.0
  %331 = vmatpush2.msra.mxu0 0.0
  %332 = vmatprep.subr.mxu0 0.0
  %333 = vmatpush2.msra.mxu0 0.0
  %334 = vmatprep.subr.mxu0 0.0
  %335 = vmatpush2.msra.mxu0 0.0
  %336 = vmatprep.mubr.f32.mxu0 0.0
  %337 = vmatmul.mubr.f32.gmra.mxu0 %v267
  %v338 = vpop.f32.mrf.mxu0
  %v339 = vadd.f32 %v265, %v338
  %v340 = vpop.f32.mrf.mxu0
  %341 = vmatprep.mubr.f32.mxu0 0.0
  %342 = vmatmul.mubr.f32.gmra.mxu0 %v270
  %v343 = vpop.f32.mrf.mxu0
  %v344 = vadd.f32 %v265, %v343
  %v345 = vpop.f32.mrf.mxu0
  %346 = vdwg.mxu0
  %vm347 = vcmask 80896
  %v349 = vsel %vm347, %v197, 0
  %v352 = vsel %vm347, %v198, 0
  %v355 = vsel %vm347, %v199, 0
  %v358 = vsel %vm347, %v200, 0
  %v361 = vsel %vm347, %v201, 0
  %vm363 = vcmask 1041408
  %v365 = vsel %vm363, %v344, 0
  %367 = vmatprep.subr.mxu0 0.0
  %368 = vmatpush1.msra.mxu0 0.0
  %369 = vmatprep.subr.mxu0 0.0
  %370 = vmatpush1.msra.mxu0 0.0
  %371 = vmatprep.subr.mxu0 0.0
  %372 = vmatpush1.msra.mxu0 0.0
  %373 = vmatprep.subr.mxu0 0.0
  %374 = vmatpush1.msra.mxu0 0.0
  %375 = vmatprep.subr.mxu0 0.0
  %376 = vmatpush1.msra.mxu0 0.0
  %377 = vmatprep.subr.mxu0 0.0
  %378 = vmatpush1.msra.mxu0 0.0
  %379 = vmatprep.subr.mxu0 0.0
  %380 = vmatpush1.msra.mxu0 0.0
  %381 = vmatprep.subr.mxu0 0.0
  %382 = vmatpush1.msra.mxu0 0.0
  %383 = vmatprep.subr.mxu0 0.0
  %384 = vmatpush1.msra.mxu0 0.0
  %385 = vmatprep.subr.mxu0 0.0
  %386 = vmatpush1.msra.mxu0 0.0
  %387 = vmatprep.subr.mxu0 0.0
  %388 = vmatpush1.msra.mxu0 0.0
  %389 = vmatprep.subr.mxu0 0.0
  %390 = vmatpush1.msra.mxu0 0.0
  %391 = vmatprep.subr.mxu0 0.0
  %392 = vmatpush1.msra.mxu0 0.0
  %393 = vmatprep.subr.mxu0 0.0
  %394 = vmatpush1.msra.mxu0 0.0
  %395 = vmatprep.subr.mxu0 0.0
  %396 = vmatpush1.msra.mxu0 %v365
  %397 = vmatprep.subr.mxu0 0.0
  %398 = vmatpush1.msra.mxu0 %v339
  %399 = vmatprep.subr.mxu0 0.0
  %400 = vmatpush2.msra.mxu0 0.0
  %401 = vmatprep.subr.mxu0 0.0
  %402 = vmatpush2.msra.mxu0 0.0
  %403 = vmatprep.subr.mxu0 0.0
  %404 = vmatpush2.msra.mxu0 0.0
  %405 = vmatprep.subr.mxu0 0.0
  %406 = vmatpush2.msra.mxu0 0.0
  %407 = vmatprep.subr.mxu0 0.0
  %408 = vmatpush2.msra.mxu0 0.0
  %409 = vmatprep.subr.mxu0 0.0
  %410 = vmatpush2.msra.mxu0 0.0
  %411 = vmatprep.subr.mxu0 0.0
  %412 = vmatpush2.msra.mxu0 0.0
  %413 = vmatprep.subr.mxu0 0.0
  %414 = vmatpush2.msra.mxu0 0.0
  %415 = vmatprep.subr.mxu0 0.0
  %416 = vmatpush2.msra.mxu0 0.0
  %417 = vmatprep.subr.mxu0 0.0
  %418 = vmatpush2.msra.mxu0 0.0
  %419 = vmatprep.subr.mxu0 0.0
  %420 = vmatpush2.msra.mxu0 0.0
  %421 = vmatprep.subr.mxu0 0.0
  %422 = vmatpush2.msra.mxu0 0.0
  %423 = vmatprep.subr.mxu0 0.0
  %424 = vmatpush2.msra.mxu0 0.0
  %425 = vmatprep.subr.mxu0 0.0
  %426 = vmatpush2.msra.mxu0 0.0
  %427 = vmatprep.subr.mxu0 0.0
  %428 = vmatpush2.msra.mxu0 0.0
  %429 = vmatprep.subr.mxu0 0.0
  %430 = vmatpush2.msra.mxu0 0.0
  %431 = vmatprep.mubr.f32.mxu0 0.0
  %432 = vmatmul.mubr.f32.gmra.mxu0 %v349
  %v433 = vpop.f32.mrf.mxu0
  %v434 = vadd.f32 0.0, %v433
  %v435 = vpop.f32.mrf.mxu0
  %436 = vmatprep.mubr.f32.mxu0 0.0
  %437 = vmatmul.mubr.f32.gmra.mxu0 %v352
  %v438 = vpop.f32.mrf.mxu0
  %v439 = vadd.f32 0.0, %v438
  %v440 = vpop.f32.mrf.mxu0
  %441 = vmatprep.mubr.f32.mxu0 0.0
  %442 = vmatmul.mubr.f32.gmra.mxu0 %v355
  %v443 = vpop.f32.mrf.mxu0
  %v444 = vadd.f32 0.0, %v443
  %v445 = vpop.f32.mrf.mxu0
  %446 = vmatprep.mubr.f32.mxu0 0.0
  %447 = vmatmul.mubr.f32.gmra.mxu0 %v358
  %v448 = vpop.f32.mrf.mxu0
  %v449 = vadd.f32 0.0, %v448
  %v450 = vpop.f32.mrf.mxu0
  %451 = vmatprep.mubr.f32.mxu0 0.0
  %452 = vmatmul.mubr.f32.gmra.mxu0 %v361
  %v453 = vpop.f32.mrf.mxu0
  %v454 = vadd.f32 0.0, %v453
  %v455 = vpop.f32.mrf.mxu0
  %456 = vdwg.mxu0
  %v457 = vmul.f32 %v434, %v204
  %v458 = vmul.f32 %v439, %v205
  %v459 = vmul.f32 %v444, %v206
  %v460 = vmul.f32 %v449, %v207
  %v461 = vmul.f32 %v454, %v208
  %463 = vrot.lane.b32.xlu0 %v339, 96
  %v464 = vpop.permute.xlu0 %463
  %465 = vrot.lane.b32.xlu0 %v344, 96
  %v466 = vpop.permute.xlu0 %465
  %v468 = vsel %vm214, %v457, 0
  %v471 = vsel %vm214, %v458, 0
  %v474 = vsel %vm214, %v459, 0
  %v477 = vsel %vm214, %v460, 0
  %v480 = vsel %vm214, %v461, 0
  %v482 = vsel %vm214, %v464, 0
  %v484 = vsel %vm214, %v466, 0
  %486 = vmatprep.subr.mxu0 0.0
  %487 = vmatpush1.xpose.msra.mxu0 0.0
  %488 = vmatprep.subr.mxu0 0.0
  %489 = vmatpush1.xpose.msra.mxu0 0.0
  %490 = vmatprep.subr.mxu0 0.0
  %491 = vmatpush1.xpose.msra.mxu0 0.0
  %492 = vmatprep.subr.mxu0 0.0
  %493 = vmatpush1.xpose.msra.mxu0 0.0
  %494 = vmatprep.subr.mxu0 0.0
  %495 = vmatpush1.xpose.msra.mxu0 0.0
  %496 = vmatprep.subr.mxu0 0.0
  %497 = vmatpush1.xpose.msra.mxu0 0.0
  %498 = vmatprep.subr.mxu0 0.0
  %499 = vmatpush1.xpose.msra.mxu0 0.0
  %500 = vmatprep.subr.mxu0 0.0
  %501 = vmatpush1.xpose.msra.mxu0 0.0
  %502 = vmatprep.subr.mxu0 0.0
  %503 = vmatpush1.xpose.msra.mxu0 0.0
  %504 = vmatprep.subr.mxu0 0.0
  %505 = vmatpush1.xpose.msra.mxu0 0.0
  %506 = vmatprep.subr.mxu0 0.0
  %507 = vmatpush1.xpose.msra.mxu0 0.0
  %508 = vmatprep.subr.mxu0 0.0
  %509 = vmatpush1.xpose.msra.mxu0 0.0
  %510 = vmatprep.subr.mxu0 0.0
  %511 = vmatpush1.xpose.msra.mxu0 0.0
  %512 = vmatprep.subr.mxu0 0.0
  %513 = vmatpush1.xpose.msra.mxu0 0.0
  %514 = vmatprep.subr.mxu0 0.0
  %515 = vmatpush1.xpose.msra.mxu0 %v484
  %516 = vmatprep.subr.mxu0 0.0
  %517 = vmatpush1.xpose.msra.mxu0 %v482
  %518 = vmatprep.subr.mxu0 0.0
  %519 = vmatpush2.xpose.msra.mxu0 0.0
  %520 = vmatprep.subr.mxu0 0.0
  %521 = vmatpush2.xpose.msra.mxu0 0.0
  %522 = vmatprep.subr.mxu0 0.0
  %523 = vmatpush2.xpose.msra.mxu0 0.0
  %524 = vmatprep.subr.mxu0 0.0
  %525 = vmatpush2.xpose.msra.mxu0 0.0
  %526 = vmatprep.subr.mxu0 0.0
  %527 = vmatpush2.xpose.msra.mxu0 0.0
  %528 = vmatprep.subr.mxu0 0.0
  %529 = vmatpush2.xpose.msra.mxu0 0.0
  %530 = vmatprep.subr.mxu0 0.0
  %531 = vmatpush2.xpose.msra.mxu0 0.0
  %532 = vmatprep.subr.mxu0 0.0
  %533 = vmatpush2.xpose.msra.mxu0 0.0
  %534 = vmatprep.subr.mxu0 0.0
  %535 = vmatpush2.xpose.msra.mxu0 0.0
  %536 = vmatprep.subr.mxu0 0.0
  %537 = vmatpush2.xpose.msra.mxu0 0.0
  %538 = vmatprep.subr.mxu0 0.0
  %539 = vmatpush2.xpose.msra.mxu0 0.0
  %540 = vmatprep.subr.mxu0 0.0
  %541 = vmatpush2.xpose.msra.mxu0 0.0
  %542 = vmatprep.subr.mxu0 0.0
  %543 = vmatpush2.xpose.msra.mxu0 0.0
  %544 = vmatprep.subr.mxu0 0.0
  %545 = vmatpush2.xpose.msra.mxu0 0.0
  %546 = vmatprep.subr.mxu0 0.0
  %547 = vmatpush2.xpose.msra.mxu0 0.0
  %548 = vmatprep.subr.mxu0 0.0
  %549 = vmatpush2.xpose.msra.mxu0 0.0
  %550 = vmatprep.mubr.f32.mxu0 0.0
  %551 = vmatmul.mubr.f32.gmra.mxu0 %v468
  %v552 = vpop.f32.mrf.mxu0
  %v553 = vadd.f32 %v209, %v552
  %v554 = vpop.f32.mrf.mxu0
  %555 = vmatprep.mubr.f32.mxu0 0.0
  %556 = vmatmul.mubr.f32.gmra.mxu0 %v471
  %v557 = vpop.f32.mrf.mxu0
  %v558 = vadd.f32 %v210, %v557
  %v559 = vpop.f32.mrf.mxu0
  %560 = vmatprep.mubr.f32.mxu0 0.0
  %561 = vmatmul.mubr.f32.gmra.mxu0 %v474
  %v562 = vpop.f32.mrf.mxu0
  %v563 = vadd.f32 %v211, %v562
  %v564 = vpop.f32.mrf.mxu0
  %565 = vmatprep.mubr.f32.mxu0 0.0
  %566 = vmatmul.mubr.f32.gmra.mxu0 %v477
  %v567 = vpop.f32.mrf.mxu0
  %v568 = vadd.f32 %v212, %v567
  %v569 = vpop.f32.mrf.mxu0
  %570 = vmatprep.mubr.f32.mxu0 0.0
  %571 = vmatmul.mubr.f32.gmra.mxu0 %v480
  %v572 = vpop.f32.mrf.mxu0
  %v573 = vadd.f32 %v213, %v572
  %v574 = vpop.f32.mrf.mxu0
  %575 = vdwg.mxu0
  %v576 = vsel %vm347, %v553, -inf
  %577 = vmax.xlane.f32.xlu0 %v576
  %v578 = vpop.xlane.xlu0 %577
  %v579 = vsel %vm347, %v558, -inf
  %580 = vmax.xlane.f32.xlu0 %v579
  %v581 = vpop.xlane.xlu0 %580
  %v582 = vsel %vm347, %v563, -inf
  %583 = vmax.xlane.f32.xlu0 %v582
  %v584 = vpop.xlane.xlu0 %583
  %v585 = vsel %vm347, %v568, -inf
  %586 = vmax.xlane.f32.xlu0 %v585
  %v587 = vpop.xlane.xlu0 %586
  %v588 = vsel %vm347, %v573, -inf
  %589 = vmax.xlane.f32.xlu0 %v588
  %v590 = vpop.xlane.xlu0 %589
  %v591 = vsub.f32 %v553, %v578
  %v592 = vsub.f32 %v558, %v581
  %v593 = vsub.f32 %v563, %v584
  %v594 = vsub.f32 %v568, %v587
  %v595 = vsub.f32 %v573, %v590
  %v596 = vmul.f32 %v591, 1.442695
  %v597 = vpow.pop %v596
  %v598 = vmul.f32 %v592, 1.442695
  %v599 = vpow.pop %v598
  %v600 = vmul.f32 %v593, 1.442695
  %v601 = vpow.pop %v600
  %v602 = vmul.f32 %v594, 1.442695
  %v603 = vpow.pop %v602
  %v604 = vmul.f32 %v595, 1.442695
  %v605 = vpow.pop %v604
  %v606 = vsel %vm347, %v597, 0.0
  %607 = vadd.xlane.f32.xlu0 %v606
  %v608 = vpop.xlane.xlu0 %607
  %v609 = vsel %vm347, %v599, 0.0
  %610 = vadd.xlane.f32.xlu0 %v609
  %v611 = vpop.xlane.xlu0 %610
  %v612 = vsel %vm347, %v601, 0.0
  %613 = vadd.xlane.f32.xlu0 %v612
  %v614 = vpop.xlane.xlu0 %613
  %v615 = vsel %vm347, %v603, 0.0
  %616 = vadd.xlane.f32.xlu0 %v615
  %v617 = vpop.xlane.xlu0 %616
  %v618 = vsel %vm347, %v605, 0.0
  %619 = vadd.xlane.f32.xlu0 %v618
  %v620 = vpop.xlane.xlu0 %619
  %v621 = vrcp.pop %v608
  %v622 = vrcp.pop %v611
  %v623 = vrcp.pop %v614
  %v624 = vrcp.pop %v617
  %v625 = vrcp.pop %v620
  %v626 = vmul.f32 %v597, %v621
  %v627 = vmul.f32 %v599, %v622
  %v628 = vmul.f32 %v601, %v623
  %v629 = vmul.f32 %v603, %v624
  %v630 = vmul.f32 %v605, %v625
  %631 = vrot.lane.b32.xlu0 %v339, 64
  %v632 = vpop.permute.xlu0 %631
  %633 = vrot.lane.b32.xlu0 %v344, 64
  %v634 = vpop.permute.xlu0 %633
  %v637 = vsel %vm347, %v626, 0
  %v640 = vsel %vm347, %v627, 0
  %v643 = vsel %vm347, %v628, 0
  %v646 = vsel %vm347, %v629, 0
  %v649 = vsel %vm347, %v630, 0
  %v651 = vsel %vm363, %v634, 0
  %653 = vmatprep.subr.mxu0 0.0
  %654 = vmatpush1.msra.mxu0 0.0
  %655 = vmatprep.subr.mxu0 0.0
  %656 = vmatpush1.msra.mxu0 0.0
  %657 = vmatprep.subr.mxu0 0.0
  %658 = vmatpush1.msra.mxu0 0.0
  %659 = vmatprep.subr.mxu0 0.0
  %660 = vmatpush1.msra.mxu0 0.0
  %661 = vmatprep.subr.mxu0 0.0
  %662 = vmatpush1.msra.mxu0 0.0
  %663 = vmatprep.subr.mxu0 0.0
  %664 = vmatpush1.msra.mxu0 0.0
  %665 = vmatprep.subr.mxu0 0.0
  %666 = vmatpush1.msra.mxu0 0.0
  %667 = vmatprep.subr.mxu0 0.0
  %668 = vmatpush1.msra.mxu0 0.0
  %669 = vmatprep.subr.mxu0 0.0
  %670 = vmatpush1.msra.mxu0 0.0
  %671 = vmatprep.subr.mxu0 0.0
  %672 = vmatpush1.msra.mxu0 0.0
  %673 = vmatprep.subr.mxu0 0.0
  %674 = vmatpush1.msra.mxu0 0.0
  %675 = vmatprep.subr.mxu0 0.0
  %676 = vmatpush1.msra.mxu0 0.0
  %677 = vmatprep.subr.mxu0 0.0
  %678 = vmatpush1.msra.mxu0 0.0
  %679 = vmatprep.subr.mxu0 0.0
  %680 = vmatpush1.msra.mxu0 0.0
  %681 = vmatprep.subr.mxu0 0.0
  %682 = vmatpush1.msra.mxu0 %v651
  %683 = vmatprep.subr.mxu0 0.0
  %684 = vmatpush1.msra.mxu0 %v632
  %685 = vmatprep.subr.mxu0 0.0
  %686 = vmatpush2.msra.mxu0 0.0
  %687 = vmatprep.subr.mxu0 0.0
  %688 = vmatpush2.msra.mxu0 0.0
  %689 = vmatprep.subr.mxu0 0.0
  %690 = vmatpush2.msra.mxu0 0.0
  %691 = vmatprep.subr.mxu0 0.0
  %692 = vmatpush2.msra.mxu0 0.0
  %693 = vmatprep.subr.mxu0 0.0
  %694 = vmatpush2.msra.mxu0 0.0
  %695 = vmatprep.subr.mxu0 0.0
  %696 = vmatpush2.msra.mxu0 0.0
  %697 = vmatprep.subr.mxu0 0.0
  %698 = vmatpush2.msra.mxu0 0.0
  %699 = vmatprep.subr.mxu0 0.0
  %700 = vmatpush2.msra.mxu0 0.0
  %701 = vmatprep.subr.mxu0 0.0
  %702 = vmatpush2.msra.mxu0 0.0
  %703 = vmatprep.subr.mxu0 0.0
  %704 = vmatpush2.msra.mxu0 0.0
  %705 = vmatprep.subr.mxu0 0.0
  %706 = vmatpush2.msra.mxu0 0.0
  %707 = vmatprep.subr.mxu0 0.0
  %708 = vmatpush2.msra.mxu0 0.0
  %709 = vmatprep.subr.mxu0 0.0
  %710 = vmatpush2.msra.mxu0 0.0
  %711 = vmatprep.subr.mxu0 0.0
  %712 = vmatpush2.msra.mxu0 0.0
  %713 = vmatprep.subr.mxu0 0.0
  %714 = vmatpush2.msra.mxu0 0.0
  %715 = vmatprep.subr.mxu0 0.0
  %716 = vmatpush2.msra.mxu0 0.0
  %717 = vmatprep.mubr.f32.mxu0 0.0
  %718 = vmatmul.mubr.f32.gmra.mxu0 %v637
  %v719 = vpop.f32.mrf.mxu0
  %v720 = vadd.f32 0.0, %v719
  %v721 = vpop.f32.mrf.mxu0
  %722 = vmatprep.mubr.f32.mxu0 0.0
  %723 = vmatmul.mubr.f32.gmra.mxu0 %v640
  %v724 = vpop.f32.mrf.mxu0
  %v725 = vadd.f32 0.0, %v724
  %v726 = vpop.f32.mrf.mxu0
  %727 = vmatprep.mubr.f32.mxu0 0.0
  %728 = vmatmul.mubr.f32.gmra.mxu0 %v643
  %v729 = vpop.f32.mrf.mxu0
  %v730 = vadd.f32 0.0, %v729
  %v731 = vpop.f32.mrf.mxu0
  %732 = vmatprep.mubr.f32.mxu0 0.0
  %733 = vmatmul.mubr.f32.gmra.mxu0 %v646
  %v734 = vpop.f32.mrf.mxu0
  %v735 = vadd.f32 0.0, %v734
  %v736 = vpop.f32.mrf.mxu0
  %737 = vmatprep.mubr.f32.mxu0 0.0
  %738 = vmatmul.mubr.f32.gmra.mxu0 %v649
  %v739 = vpop.f32.mrf.mxu0
  %v740 = vadd.f32 0.0, %v739
  %v741 = vpop.f32.mrf.mxu0
  %742 = vdwg.mxu0
  %v743 = vmul.f32 %v720, %v204
  %v744 = vmul.f32 %v725, %v205
  %v745 = vmul.f32 %v730, %v206
  %v746 = vmul.f32 %v735, %v207
  %v747 = vmul.f32 %v740, %v208
  %vm748 = vcmask 326656
  %v750 = vsel %vm748, %v202, 0
  %v753 = vsel %vm748, %v203, 0
  %755 = vmatprep.subr.mxu0 0.0
  %756 = vmatpush1.msra.mxu0 0.0
  %757 = vmatprep.subr.mxu0 0.0
  %758 = vmatpush1.msra.mxu0 0.0
  %759 = vmatprep.subr.mxu0 0.0
  %760 = vmatpush1.msra.mxu0 0.0
  %761 = vmatprep.subr.mxu0 0.0
  %762 = vmatpush1.msra.mxu0 0.0
  %763 = vmatprep.subr.mxu0 0.0
  %764 = vmatpush1.msra.mxu0 0.0
  %765 = vmatprep.subr.mxu0 0.0
  %766 = vmatpush1.msra.mxu0 0.0
  %767 = vmatprep.subr.mxu0 0.0
  %768 = vmatpush1.msra.mxu0 0.0
  %769 = vmatprep.subr.mxu0 0.0
  %770 = vmatpush1.msra.mxu0 0.0
  %771 = vmatprep.subr.mxu0 0.0
  %772 = vmatpush1.msra.mxu0 0.0
  %773 = vmatprep.subr.mxu0 0.0
  %774 = vmatpush1.msra.mxu0 0.0
  %775 = vmatprep.subr.mxu0 0.0
  %776 = vmatpush1.msra.mxu0 0.0
  %777 = vmatprep.subr.mxu0 0.0
  %778 = vmatpush1.msra.mxu0 %v747
  %779 = vmatprep.subr.mxu0 0.0
  %780 = vmatpush1.msra.mxu0 %v746
  %781 = vmatprep.subr.mxu0 0.0
  %782 = vmatpush1.msra.mxu0 %v745
  %783 = vmatprep.subr.mxu0 0.0
  %784 = vmatpush1.msra.mxu0 %v744
  %785 = vmatprep.subr.mxu0 0.0
  %786 = vmatpush1.msra.mxu0 %v743
  %787 = vmatprep.subr.mxu0 0.0
  %788 = vmatpush2.msra.mxu0 0.0
  %789 = vmatprep.subr.mxu0 0.0
  %790 = vmatpush2.msra.mxu0 0.0
  %791 = vmatprep.subr.mxu0 0.0
  %792 = vmatpush2.msra.mxu0 0.0
  %793 = vmatprep.subr.mxu0 0.0
  %794 = vmatpush2.msra.mxu0 0.0
  %795 = vmatprep.subr.mxu0 0.0
  %796 = vmatpush2.msra.mxu0 0.0
  %797 = vmatprep.subr.mxu0 0.0
  %798 = vmatpush2.msra.mxu0 0.0
  %799 = vmatprep.subr.mxu0 0.0
  %800 = vmatpush2.msra.mxu0 0.0
  %801 = vmatprep.subr.mxu0 0.0
  %802 = vmatpush2.msra.mxu0 0.0
  %803 = vmatprep.subr.mxu0 0.0
  %804 = vmatpush2.msra.mxu0 0.0
  %805 = vmatprep.subr.mxu0 0.0
  %806 = vmatpush2.msra.mxu0 0.0
  %807 = vmatprep.subr.mxu0 0.0
  %808 = vmatpush2.msra.mxu0 0.0
  %809 = vmatprep.subr.mxu0 0.0
  %810 = vmatpush2.msra.mxu0 0.0
  %811 = vmatprep.subr.mxu0 0.0
  %812 = vmatpush2.msra.mxu0 0.0
  %813 = vmatprep.subr.mxu0 0.0
  %814 = vmatpush2.msra.mxu0 0.0
  %815 = vmatprep.subr.mxu0 0.0
  %816 = vmatpush2.msra.mxu0 0.0
  %817 = vmatprep.subr.mxu0 0.0
  %818 = vmatpush2.msra.mxu0 0.0
  %819 = vmatprep.mubr.f32.mxu0 0.0
  %820 = vmatmul.mubr.f32.gmra.mxu0 %v750
  %v821 = vpop.f32.mrf.mxu0
  %v822 = vadd.f32 0.0, %v821
  %v823 = vpop.f32.mrf.mxu0
  %824 = vmatprep.mubr.f32.mxu0 0.0
  %825 = vmatmul.mubr.f32.gmra.mxu0 %v753
  %v826 = vpop.f32.mrf.mxu0
  %v827 = vadd.f32 0.0, %v826
  %v828 = vpop.f32.mrf.mxu0
  %829 = vdwg.mxu0
  %v830 = vld [vmem:[%s1 + $0x108] sm:$0xff]
  %v831 = vld [vmem:[%s1 + $0x110] sm:$0xff]
  %v832 = vld [vmem:[%s1 + $0x118] sm:$0xff]
  %v833 = vld [vmem:[%s1 + $0x120] sm:$0xff]
  %v835 = vsel %vm214, %v822, 0
  %v838 = vsel %vm214, %v827, 0
  %840 = vmatprep.subr.mxu0 0.0
  %841 = vmatpush1.msra.mxu0 0.0
  %842 = vmatprep.subr.mxu0 0.0
  %843 = vmatpush1.msra.mxu0 0.0
  %844 = vmatprep.subr.mxu0 0.0
  %845 = vmatpush1.msra.mxu0 0.0
  %846 = vmatprep.subr.mxu0 0.0
  %847 = vmatpush1.msra.mxu0 0.0
  %848 = vmatprep.subr.mxu0 0.0
  %849 = vmatpush1.msra.mxu0 0.0
  %850 = vmatprep.subr.mxu0 0.0
  %851 = vmatpush1.msra.mxu0 0.0
  %852 = vmatprep.subr.mxu0 0.0
  %853 = vmatpush1.msra.mxu0 0.0
  %854 = vmatprep.subr.mxu0 0.0
  %855 = vmatpush1.msra.mxu0 0.0
  %856 = vmatprep.subr.mxu0 0.0
  %857 = vmatpush1.msra.mxu0 0.0
  %858 = vmatprep.subr.mxu0 0.0
  %859 = vmatpush1.msra.mxu0 0.0
  %860 = vmatprep.subr.mxu0 0.0
  %861 = vmatpush1.msra.mxu0 0.0
  %862 = vmatprep.subr.mxu0 0.0
  %863 = vmatpush1.msra.mxu0 0.0
  %864 = vmatprep.subr.mxu0 0.0
  %865 = vmatpush1.msra.mxu0 %v833
  %866 = vmatprep.subr.mxu0 0.0
  %867 = vmatpush1.msra.mxu0 %v832
  %868 = vmatprep.subr.mxu0 0.0
  %869 = vmatpush1.msra.mxu0 %v831
  %870 = vmatprep.subr.mxu0 0.0
  %871 = vmatpush1.msra.mxu0 %v830
  %872 = vmatprep.subr.mxu0 0.0
  %873 = vmatpush2.msra.mxu0 0.0
  %874 = vmatprep.subr.mxu0 0.0
  %875 = vmatpush2.msra.mxu0 0.0
  %876 = vmatprep.subr.mxu0 0.0
  %877 = vmatpush2.msra.mxu0 0.0
  %878 = vmatprep.subr.mxu0 0.0
  %879 = vmatpush2.msra.mxu0 0.0
  %880 = vmatprep.subr.mxu0 0.0
  %881 = vmatpush2.msra.mxu0 0.0
  %882 = vmatprep.subr.mxu0 0.0
  %883 = vmatpush2.msra.mxu0 0.0
  %884 = vmatprep.subr.mxu0 0.0
  %885 = vmatpush2.msra.mxu0 0.0
  %886 = vmatprep.subr.mxu0 0.0
  %887 = vmatpush2.msra.mxu0 0.0
  %888 = vmatprep.subr.mxu0 0.0
  %889 = vmatpush2.msra.mxu0 0.0
  %890 = vmatprep.subr.mxu0 0.0
  %891 = vmatpush2.msra.mxu0 0.0
  %892 = vmatprep.subr.mxu0 0.0
  %893 = vmatpush2.msra.mxu0 0.0
  %894 = vmatprep.subr.mxu0 0.0
  %895 = vmatpush2.msra.mxu0 0.0
  %896 = vmatprep.subr.mxu0 0.0
  %897 = vmatpush2.msra.mxu0 0.0
  %898 = vmatprep.subr.mxu0 0.0
  %899 = vmatpush2.msra.mxu0 0.0
  %900 = vmatprep.subr.mxu0 0.0
  %901 = vmatpush2.msra.mxu0 0.0
  %902 = vmatprep.subr.mxu0 0.0
  %903 = vmatpush2.msra.mxu0 0.0
  %904 = vmatprep.mubr.f32.mxu0 0.0
  %905 = vmatmul.mubr.f32.gmra.mxu0 %v835
  %v906 = vpop.f32.mrf.mxu0
  %v907 = vadd.f32 0.0, %v906
  %v908 = vpop.f32.mrf.mxu0
  %909 = vmatprep.mubr.f32.mxu0 0.0
  %910 = vmatmul.mubr.f32.gmra.mxu0 %v838
  %v911 = vpop.f32.mrf.mxu0
  %v912 = vadd.f32 0.0, %v911
  %v913 = vpop.f32.mrf.mxu0
  %914 = vdwg.mxu0
  %v915 = vadd.f32 %v189, %v907
  %v916 = vadd.f32 %v194, %v912
  %v917 = vld [vmem:[%s1 + $0x128] sm:$0x1]
  %v918 = vlaneseq
  %v919 = vshrl.u32 %v918, 7
  %v920 = vsub.s32 0, %v919
  %v921 = vrot.slane %v917, %v920
  %v922 = vadd.f32 %v915, %v921
  %v923 = vadd.f32 %v916, %v921
  %v924 = vsel %vm214, %v922, 0.0
  %925 = vadd.xlane.f32.xlu0 %v924
  %v926 = vpop.xlane.xlu0 %925
  %v927 = vsel %vm218, %v923, 0.0
  %928 = vadd.xlane.f32.xlu0 %v927
  %v929 = vpop.xlane.xlu0 %928
  %v930 = vmul.f32 %v926, %v222
  %v931 = vmul.f32 %v929, %v222
  %v932 = vsub.f32 %v922, %v930
  %v933 = vsub.f32 %v923, %v931
  %v934 = vmul.f32 %v932, %v932
  %v935 = vmul.f32 %v933, %v933
  %v936 = vsel %vm214, %v934, 0.0
  %937 = vadd.xlane.f32.xlu0 %v936
  %v938 = vpop.xlane.xlu0 %937
  %v939 = vsel %vm218, %v935, 0.0
  %940 = vadd.xlane.f32.xlu0 %v939
  %v941 = vpop.xlane.xlu0 %940
  %v942 = vmul.f32 %v938, %v222
  %v943 = vmul.f32 %v941, %v222
  %v944 = vadd.f32 %v942, 1e-12
  %v945 = vadd.f32 %v943, 1e-12
  %v946 = vrsqrt.pop %v944
  %v947 = vrsqrt.pop %v945
  %v948 = vmul.f32 %v932, %v946
  %v949 = vmul.f32 %v933, %v947
  %v950 = vld [vmem:[%s1 + $0x130] sm:$0x1]
  %v951 = vlaneseq
  %v952 = vshrl.u32 %v951, 7
  %v953 = vsub.s32 0, %v952
  %v954 = vrot.slane %v950, %v953
  %v955 = vmul.f32 %v948, %v954
  %v956 = vmul.f32 %v949, %v954
  %v957 = vld [vmem:[%s1 + $0x138] sm:$0x1]
  %v958 = vlaneseq
  %v959 = vshrl.u32 %v958, 7
  %v960 = vsub.s32 0, %v959
  %v961 = vrot.slane %v957, %v960
  %v962 = vadd.f32 %v955, %v961
  %v963 = vadd.f32 %v956, %v961
  %v964 = vld [vmem:[%s1 + $0x140] sm:$0xff]
  %v965 = vld [vmem:[%s1 + $0x148] sm:$0xff]
  %v966 = vld [vmem:[%s1 + $0x150] sm:$0xff]
  %v967 = vld [vmem:[%s1 + $0x158] sm:$0xff]
  %v968 = vld [vmem:[%s1 + $0x160] sm:$0x1]
  %v969 = vlaneseq
  %v970 = vshrl.u32 %v969, 7
  %v971 = vsub.s32 0, %v970
  %v972 = vrot.slane %v968, %v971
  %v974 = vsel %vm214, %v962, 0
  %v977 = vsel %vm214, %v963, 0
  %979 = vmatprep.subr.mxu0 0.0
  %980 = vmatpush1.msra.mxu0 0.0
  %981 = vmatprep.subr.mxu0 0.0
  %982 = vmatpush1.msra.mxu0 0.0
  %983 = vmatprep.subr.mxu0 0.0
  %984 = vmatpush1.msra.mxu0 0.0
  %985 = vmatprep.subr.mxu0 0.0
  %986 = vmatpush1.msra.mxu0 0.0
  %987 = vmatprep.subr.mxu0 0.0
  %988 = vmatpush1.msra.mxu0 0.0
  %989 = vmatprep.subr.mxu0 0.0
  %990 = vmatpush1.msra.mxu0 0.0
  %991 = vmatprep.subr.mxu0 0.0
  %992 = vmatpush1.msra.mxu0 0.0
  %993 = vmatprep.subr.mxu0 0.0
  %994 = vmatpush1.msra.mxu0 0.0
  %995 = vmatprep.subr.mxu0 0.0
  %996 = vmatpush1.msra.mxu0 0.0
  %997 = vmatprep.subr.mxu0 0.0
  %998 = vmatpush1.msra.mxu0 0.0
  %999 = vmatprep.subr.mxu0 0.0
  %1000 = vmatpush1.msra.mxu0 0.0
  %1001 = vmatprep.subr.mxu0 0.0
  %1002 = vmatpush1.msra.mxu0 0.0
  %1003 = vmatprep.subr.mxu0 0.0
  %1004 = vmatpush1.msra.mxu0 %v967
  %1005 = vmatprep.subr.mxu0 0.0
  %1006 = vmatpush1.msra.mxu0 %v966
  %1007 = vmatprep.subr.mxu0 0.0
  %1008 = vmatpush1.msra.mxu0 %v965
  %1009 = vmatprep.subr.mxu0 0.0
  %1010 = vmatpush1.msra.mxu0 %v964
  %1011 = vmatprep.subr.mxu0 0.0
  %1012 = vmatpush2.msra.mxu0 0.0
  %1013 = vmatprep.subr.mxu0 0.0
  %1014 = vmatpush2.msra.mxu0 0.0
  %1015 = vmatprep.subr.mxu0 0.0
  %1016 = vmatpush2.msra.mxu0 0.0
  %1017 = vmatprep.subr.mxu0 0.0
  %1018 = vmatpush2.msra.mxu0 0.0
  %1019 = vmatprep.subr.mxu0 0.0
  %1020 = vmatpush2.msra.mxu0 0.0
  %1021 = vmatprep.subr.mxu0 0.0
  %1022 = vmatpush2.msra.mxu0 0.0
  %1023 = vmatprep.subr.mxu0 0.0
  %1024 = vmatpush2.msra.mxu0 0.0
  %1025 = vmatprep.subr.mxu0 0.0
  %1026 = vmatpush2.msra.mxu0 0.0
  %1027 = vmatprep.subr.mxu0 0.0
  %1028 = vmatpush2.msra.mxu0 0.0
  %1029 = vmatprep.subr.mxu0 0.0
  %1030 = vmatpush2.msra.mxu0 0.0
  %1031 = vmatprep.subr.mxu0 0.0
  %1032 = vmatpush2.msra.mxu0 0.0
  %1033 = vmatprep.subr.mxu0 0.0
  %1034 = vmatpush2.msra.mxu0 0.0
  %1035 = vmatprep.subr.mxu0 0.0
  %1036 = vmatpush2.msra.mxu0 0.0
  %1037 = vmatprep.subr.mxu0 0.0
  %1038 = vmatpush2.msra.mxu0 0.0
  %1039 = vmatprep.subr.mxu0 0.0
  %1040 = vmatpush2.msra.mxu0 0.0
  %1041 = vmatprep.subr.mxu0 0.0
  %1042 = vmatpush2.msra.mxu0 0.0
  %1043 = vmatprep.mubr.f32.mxu0 0.0
  %1044 = vmatmul.mubr.f32.gmra.mxu0 %v974
  %v1045 = vpop.f32.mrf.mxu0
  %v1046 = vadd.f32 %v972, %v1045
  %v1047 = vpop.f32.mrf.mxu0
  %1048 = vmatprep.mubr.f32.mxu0 0.0
  %1049 = vmatmul.mubr.f32.gmra.mxu0 %v977
  %v1050 = vpop.f32.mrf.mxu0
  %v1051 = vadd.f32 %v972, %v1050
  %v1052 = vpop.f32.mrf.mxu0
  %1053 = vdwg.mxu0
  %v1054 = vmul.f32 %v1046, 0.5
  %v1055 = vmul.f32 %v1051, 0.5
  %v1056 = vmul.f32 %v1046, 0.70710677
  %v1057 = vmul.f32 %v1051, 0.70710677
  %v1058 = verf.f32.pop %v1056
  %v1059 = verf.f32.pop %v1057
  %v1060 = vadd.f32 %v1058, 1.0
  %v1061 = vadd.f32 %v1059, 1.0
  %v1062 = vmul.f32 %v1054, %v1060
  %v1063 = vmul.f32 %v1055, %v1061
  %v1064 = vld [vmem:[%s1 + $0x168] sm:$0xff]
  %v1065 = vld [vmem:[%s1 + $0x170] sm:$0xff]
  %v1066 = vld [vmem:[%s1 + $0x178] sm:$0xff]
  %v1067 = vld [vmem:[%s1 + $0x180] sm:$0xff]
  %v1068 = vld [vmem:[%s1 + $0x188] sm:$0xff]
  %v1069 = vld [vmem:[%s1 + $0x190] sm:$0xff]
  %v1070 = vld [vmem:[%s1 + $0x198] sm:$0xff]
  %v1071 = vld [vmem:[%s1 + $0x1a0] sm:$0xff]
  %v1073 = vsel %vm37, %v1062, 0
  %v1076 = vsel %vm37, %v1063, 0
  %1078 = vmatprep.subr.mxu0 0.0
  %1079 = vmatpush1.msra.mxu0 0.0
  %1080 = vmatprep.subr.mxu0 0.0
  %1081 = vmatpush1.msra.mxu0 0.0
  %1082 = vmatprep.subr.mxu0 0.0
  %1083 = vmatpush1.msra.mxu0 0.0
  %1084 = vmatprep.subr.mxu0 0.0
  %1085 = vmatpush1.msra.mxu0 0.0
  %1086 = vmatprep.subr.mxu0 0.0
  %1087 = vmatpush1.msra.mxu0 0.0
  %1088 = vmatprep.subr.mxu0 0.0
  %1089 = vmatpush1.msra.mxu0 0.0
  %1090 = vmatprep.subr.mxu0 0.0
  %1091 = vmatpush1.msra.mxu0 0.0
  %1092 = vmatprep.subr.mxu0 0.0
  %1093 = vmatpush1.msra.mxu0 0.0
  %1094 = vmatprep.subr.mxu0 0.0
  %1095 = vmatpush1.msra.mxu0 %v1071
  %1096 = vmatprep.subr.mxu0 0.0
  %1097 = vmatpush1.msra.mxu0 %v1070
  %1098 = vmatprep.subr.mxu0 0.0
  %1099 = vmatpush1.msra.mxu0 %v1069
  %1100 = vmatprep.subr.mxu0 0.0
  %1101 = vmatpush1.msra.mxu0 %v1068
  %1102 = vmatprep.subr.mxu0 0.0
  %1103 = vmatpush1.msra.mxu0 %v1067
  %1104 = vmatprep.subr.mxu0 0.0
  %1105 = vmatpush1.msra.mxu0 %v1066
  %1106 = vmatprep.subr.mxu0 0.0
  %1107 = vmatpush1.msra.mxu0 %v1065
  %1108 = vmatprep.subr.mxu0 0.0
  %1109 = vmatpush1.msra.mxu0 %v1064
  %1110 = vmatprep.subr.mxu0 0.0
  %1111 = vmatpush2.msra.mxu0 0.0
  %1112 = vmatprep.subr.mxu0 0.0
  %1113 = vmatpush2.msra.mxu0 0.0
  %1114 = vmatprep.subr.mxu0 0.0
  %1115 = vmatpush2.msra.mxu0 0.0
  %1116 = vmatprep.subr.mxu0 0.0
  %1117 = vmatpush2.msra.mxu0 0.0
  %1118 = vmatprep.subr.mxu0 0.0
  %1119 = vmatpush2.msra.mxu0 0.0
  %1120 = vmatprep.subr.mxu0 0.0
  %1121 = vmatpush2.msra.mxu0 0.0
  %1122 = vmatprep.subr.mxu0 0.0
  %1123 = vmatpush2.msra.mxu0 0.0
  %1124 = vmatprep.subr.mxu0 0.0
  %1125 = vmatpush2.msra.mxu0 0.0
  %1126 = vmatprep.subr.mxu0 0.0
  %1127 = vmatpush2.msra.mxu0 0.0
  %1128 = vmatprep.subr.mxu0 0.0
  %1129 = vmatpush2.msra.mxu0 0.0
  %1130 = vmatprep.subr.mxu0 0.0
  %1131 = vmatpush2.msra.mxu0 0.0
  %1132 = vmatprep.subr.mxu0 0.0
  %1133 = vmatpush2.msra.mxu0 0.0
  %1134 = vmatprep.subr.mxu0 0.0
  %1135 = vmatpush2.msra.mxu0 0.0
  %1136 = vmatprep.subr.mxu0 0.0
  %1137 = vmatpush2.msra.mxu0 0.0
  %1138 = vmatprep.subr.mxu0 0.0
  %1139 = vmatpush2.msra.mxu0 0.0
  %1140 = vmatprep.subr.mxu0 0.0
  %1141 = vmatpush2.msra.mxu0 0.0
  %1142 = vmatprep.mubr.f32.mxu0 0.0
  %1143 = vmatmul.mubr.f32.gmra.mxu0 %v1073
  %v1144 = vpop.f32.mrf.mxu0
  %v1145 = vadd.f32 0.0, %v1144
  %v1146 = vpop.f32.mrf.mxu0
  %1147 = vmatprep.mubr.f32.mxu0 0.0
  %1148 = vmatmul.mubr.f32.gmra.mxu0 %v1076
  %v1149 = vpop.f32.mrf.mxu0
  %v1150 = vadd.f32 0.0, %v1149
  %v1151 = vpop.f32.mrf.mxu0
  %1152 = vdwg.mxu0
  %v1153 = vadd.f32 %v922, %v1145
  %v1154 = vadd.f32 %v923, %v1150
  %v1155 = vld [vmem:[%s1 + $0x1a8] sm:$0x1]
  %v1156 = vlaneseq
  %v1157 = vshrl.u32 %v1156, 7
  %v1158 = vsub.s32 0, %v1157
  %v1159 = vrot.slane %v1155, %v1158
  %v1160 = vadd.f32 %v1153, %v1159
  %v1161 = vadd.f32 %v1154, %v1159
  %v1162 = vsel %vm214, %v1160, 0.0
  %1163 = vadd.xlane.f32.xlu0 %v1162
  %v1164 = vpop.xlane.xlu0 %1163
  %v1165 = vsel %vm218, %v1161, 0.0
  %1166 = vadd.xlane.f32.xlu0 %v1165
  %v1167 = vpop.xlane.xlu0 %1166
  %v1168 = vmul.f32 %v1164, %v222
  %v1169 = vmul.f32 %v1167, %v222
  %v1170 = vsub.f32 %v1160, %v1168
  %v1171 = vsub.f32 %v1161, %v1169
  %v1172 = vmul.f32 %v1170, %v1170
  %v1173 = vmul.f32 %v1171, %v1171
  %v1174 = vsel %vm214, %v1172, 0.0
  %1175 = vadd.xlane.f32.xlu0 %v1174
  %v1176 = vpop.xlane.xlu0 %1175
  %v1177 = vsel %vm218, %v1173, 0.0
  %1178 = vadd.xlane.f32.xlu0 %v1177
  %v1179 = vpop.xlane.xlu0 %1178
  %v1180 = vmul.f32 %v1176, %v222
  %v1181 = vmul.f32 %v1179, %v222
  %v1182 = vadd.f32 %v1180, 1e-12
  %v1183 = vadd.f32 %v1181, 1e-12
  %v1184 = vrsqrt.pop %v1182
  %v1185 = vrsqrt.pop %v1183
  %v1186 = vmul.f32 %v1170, %v1184
  %v1187 = vmul.f32 %v1171, %v1185
  %v1188 = vld [vmem:[%s1 + $0x1b0] sm:$0x1]
  %v1189 = vlaneseq
  %v1190 = vshrl.u32 %v1189, 7
  %v1191 = vsub.s32 0, %v1190
  %v1192 = vrot.slane %v1188, %v1191
  %v1193 = vmul.f32 %v1186, %v1192
  %v1194 = vmul.f32 %v1187, %v1192
  %v1195 = vld [vmem:[%s1 + $0x1b8] sm:$0x1]
  %v1196 = vlaneseq
  %v1197 = vshrl.u32 %v1196, 7
  %v1198 = vsub.s32 0, %v1197
  %v1199 = vrot.slane %v1195, %v1198
  %v1200 = vadd.f32 %v1193, %v1199
  %v1201 = vadd.f32 %v1194, %v1199
  %v1202 = vld [vmem:[%s1 + $0x1c0] sm:$0xff]
  %v1203 = vld [vmem:[%s1 + $0x1c8] sm:$0xff]
  %v1204 = vld [vmem:[%s1 + $0x1d0] sm:$0xff]
  %v1205 = vld [vmem:[%s1 + $0x1d8] sm:$0xff]
  %v1206 = vld [vmem:[%s1 + $0x1e0] sm:$0x1]
  %v1207 = vlaneseq
  %v1208 = vshrl.u32 %v1207, 7
  %v1209 = vsub.s32 0, %v1208
  %v1210 = vrot.slane %v1206, %v1209
  %v1212 = vsel %vm214, %v1200, 0
  %v1215 = vsel %vm214, %v1201, 0
  %1217 = vmatprep.subr.mxu0 0.0
  %1218 = vmatpush1.msra.mxu0 0.0
  %1219 = vmatprep.subr.mxu0 0.0
  %1220 = vmatpush1.msra.mxu0 0.0
  %1221 = vmatprep.subr.mxu0 0.0
  %1222 = vmatpush1.msra.mxu0 0.0
  %1223 = vmatprep.subr.mxu0 0.0
  %1224 = vmatpush1.msra.mxu0 0.0
  %1225 = vmatprep.subr.mxu0 0.0
  %1226 = vmatpush1.msra.mxu0 0.0
  %1227 = vmatprep.subr.mxu0 0.0
  %1228 = vmatpush1.msra.mxu0 0.0
  %1229 = vmatprep.subr.mxu0 0.0
  %1230 = vmatpush1.msra.mxu0 0.0
  %1231 = vmatprep.subr.mxu0 0.0
  %1232 = vmatpush1.msra.mxu0 0.0
  %1233 = vmatprep.subr.mxu0 0.0
  %1234 = vmatpush1.msra.mxu0 0.0
  %1235 = vmatprep.subr.mxu0 0.0
  %1236 = vmatpush1.msra.mxu0 0.0
  %1237 = vmatprep.subr.mxu0 0.0
  %1238 = vmatpush1.msra.mxu0 0.0
  %1239 = vmatprep.subr.mxu0 0.0
  %1240 = vmatpush1.msra.mxu0 0.0
  %1241 = vmatprep.subr.mxu0 0.0
  %1242 = vmatpush1.msra.mxu0 %v1205
  %1243 = vmatprep.subr.mxu0 0.0
  %1244 = vmatpush1.msra.mxu0 %v1204
  %1245 = vmatprep.subr.mxu0 0.0
  %1246 = vmatpush1.msra.mxu0 %v1203
  %1247 = vmatprep.subr.mxu0 0.0
  %1248 = vmatpush1.msra.mxu0 %v1202
  %1249 = vmatprep.subr.mxu0 0.0
  %1250 = vmatpush2.msra.mxu0 0.0
  %1251 = vmatprep.subr.mxu0 0.0
  %1252 = vmatpush2.msra.mxu0 0.0
  %1253 = vmatprep.subr.mxu0 0.0
  %1254 = vmatpush2.msra.mxu0 0.0
  %1255 = vmatprep.subr.mxu0 0.0
  %1256 = vmatpush2.msra.mxu0 0.0
  %1257 = vmatprep.subr.mxu0 0.0
  %1258 = vmatpush2.msra.mxu0 0.0
  %1259 = vmatprep.subr.mxu0 0.0
  %1260 = vmatpush2.msra.mxu0 0.0
  %1261 = vmatprep.subr.mxu0 0.0
  %1262 = vmatpush2.msra.mxu0 0.0
  %1263 = vmatprep.subr.mxu0 0.0
  %1264 = vmatpush2.msra.mxu0 0.0
  %1265 = vmatprep.subr.mxu0 0.0
  %1266 = vmatpush2.msra.mxu0 0.0
  %1267 = vmatprep.subr.mxu0 0.0
  %1268 = vmatpush2.msra.mxu0 0.0
  %1269 = vmatprep.subr.mxu0 0.0
  %1270 = vmatpush2.msra.mxu0 0.0
  %1271 = vmatprep.subr.mxu0 0.0
  %1272 = vmatpush2.msra.mxu0 0.0
  %1273 = vmatprep.subr.mxu0 0.0
  %1274 = vmatpush2.msra.mxu0 0.0
  %1275 = vmatprep.subr.mxu0 0.0
  %1276 = vmatpush2.msra.mxu0 0.0
  %1277 = vmatprep.subr.mxu0 0.0
  %1278 = vmatpush2.msra.mxu0 0.0
  %1279 = vmatprep.subr.mxu0 0.0
  %1280 = vmatpush2.msra.mxu0 0.0
  %1281 = vmatprep.mubr.f32.mxu0 0.0
  %1282 = vmatmul.mubr.f32.gmra.mxu0 %v1212
  %v1283 = vpop.f32.mrf.mxu0
  %v1284 = vadd.f32 %v1210, %v1283
  %v1285 = vpop.f32.mrf.mxu0
  %1286 = vmatprep.mubr.f32.mxu0 0.0
  %1287 = vmatmul.mubr.f32.gmra.mxu0 %v1215
  %v1288 = vpop.f32.mrf.mxu0
  %v1289 = vadd.f32 %v1210, %v1288
  %v1290 = vpop.f32.mrf.mxu0
  %1291 = vdwg.mxu0
  %v1293 = vsel %vm363, %v1289, 0
  %1295 = vmatprep.subr.mxu0 0.0
  %1296 = vmatpush1.msra.mxu0 0.0
  %1297 = vmatprep.subr.mxu0 0.0
  %1298 = vmatpush1.msra.mxu0 0.0
  %1299 = vmatprep.subr.mxu0 0.0
  %1300 = vmatpush1.msra.mxu0 0.0
  %1301 = vmatprep.subr.mxu0 0.0
  %1302 = vmatpush1.msra.mxu0 0.0
  %1303 = vmatprep.subr.mxu0 0.0
  %1304 = vmatpush1.msra.mxu0 0.0
  %1305 = vmatprep.subr.mxu0 0.0
  %1306 = vmatpush1.msra.mxu0 0.0
  %1307 = vmatprep.subr.mxu0 0.0
  %1308 = vmatpush1.msra.mxu0 0.0
  %1309 = vmatprep.subr.mxu0 0.0
  %1310 = vmatpush1.msra.mxu0 0.0
  %1311 = vmatprep.subr.mxu0 0.0
  %1312 = vmatpush1.msra.mxu0 0.0
  %1313 = vmatprep.subr.mxu0 0.0
  %1314 = vmatpush1.msra.mxu0 0.0
  %1315 = vmatprep.subr.mxu0 0.0
  %1316 = vmatpush1.msra.mxu0 0.0
  %1317 = vmatprep.subr.mxu0 0.0
  %1318 = vmatpush1.msra.mxu0 0.0
  %1319 = vmatprep.subr.mxu0 0.0
  %1320 = vmatpush1.msra.mxu0 0.0
  %1321 = vmatprep.subr.mxu0 0.0
  %1322 = vmatpush1.msra.mxu0 0.0
  %1323 = vmatprep.subr.mxu0 0.0
  %1324 = vmatpush1.msra.mxu0 %v1293
  %1325 = vmatprep.subr.mxu0 0.0
  %1326 = vmatpush1.msra.mxu0 %v1284
  %1327 = vmatprep.subr.mxu0 0.0
  %1328 = vmatpush2.msra.mxu0 0.0
  %1329 = vmatprep.subr.mxu0 0.0
  %1330 = vmatpush2.msra.mxu0 0.0
  %1331 = vmatprep.subr.mxu0 0.0
  %1332 = vmatpush2.msra.mxu0 0.0
  %1333 = vmatprep.subr.mxu0 0.0
  %1334 = vmatpush2.msra.mxu0 0.0
  %1335 = vmatprep.subr.mxu0 0.0
  %1336 = vmatpush2.msra.mxu0 0.0
  %1337 = vmatprep.subr.mxu0 0.0
  %1338 = vmatpush2.msra.mxu0 0.0
  %1339 = vmatprep.subr.mxu0 0.0
  %1340 = vmatpush2.msra.mxu0 0.0
  %1341 = vmatprep.subr.mxu0 0.0
  %1342 = vmatpush2.msra.mxu0 0.0
  %1343 = vmatprep.subr.mxu0 0.0
  %1344 = vmatpush2.msra.mxu0 0.0
  %1345 = vmatprep.subr.mxu0 0.0
  %1346 = vmatpush2.msra.mxu0 0.0
  %1347 = vmatprep.subr.mxu0 0.0
  %1348 = vmatpush2.msra.mxu0 0.0
  %1349 = vmatprep.subr.mxu0 0.0
  %1350 = vmatpush2.msra.mxu0 0.0
  %1351 = vmatprep.subr.mxu0 0.0
  %1352 = vmatpush2.msra.mxu0 0.0
  %1353 = vmatprep.subr.mxu0 0.0
  %1354 = vmatpush2.msra.mxu0 0.0
  %1355 = vmatprep.subr.mxu0 0.0
  %1356 = vmatpush2.msra.mxu0 0.0
  %1357 = vmatprep.subr.mxu0 0.0
  %1358 = vmatpush2.msra.mxu0 0.0
  %1359 = vmatprep.mubr.f32.mxu0 0.0
  %1360 = vmatmul.mubr.f32.gmra.mxu0 %v349
  %v1361 = vpop.f32.mrf.mxu0
  %v1362 = vadd.f32 0.0, %v1361
  %v1363 = vpop.f32.mrf.mxu0
  %1364 = vmatprep.mubr.f32.mxu0 0.0
  %1365 = vmatmul.mubr.f32.gmra.mxu0 %v352
  %v1366 = vpop.f32.mrf.mxu0
  %v1367 = vadd.f32 0.0, %v1366
  %v1368 = vpop.f32.mrf.mxu0
  %1369 = vmatprep.mubr.f32.mxu0 0.0
  %1370 = vmatmul.mubr.f32.gmra.mxu0 %v355
  %v1371 = vpop.f32.mrf.mxu0
  %v1372 = vadd.f32 0.0, %v1371
  %v1373 = vpop.f32.mrf.mxu0
  %1374 = vmatprep.mubr.f32.mxu0 0.0
  %1375 = vmatmul.mubr.f32.gmra.mxu0 %v358
  %v1376 = vpop.f32.mrf.mxu0
  %v1377 = vadd.f32 0.0, %v1376
  %v1378 = vpop.f32.mrf.mxu0
  %1379 = vmatprep.mubr.f32.mxu0 0.0
  %1380 = vmatmul.mubr.f32.gmra.mxu0 %v361
  %v1381 = vpop.f32.mrf.mxu0
  %v1382 = vadd.f32 0.0, %v1381
  %v1383 = vpop.f32.mrf.mxu0
  %1384 = vdwg.mxu0
  %v1385 = vmul.f32 %v1362, %v204
  %v1386 = vmul.f32 %v1367, %v205
  %v1387 = vmul.f32 %v1372, %v206
  %v1388 = vmul.f32 %v1377, %v207
  %v1389 = vmul.f32 %v1382, %v208
  %1391 = vrot.lane.b32.xlu0 %v1284, 96
  %v1392 = vpop.permute.xlu0 %1391
  %1393 = vrot.lane.b32.xlu0 %v1289, 96
  %v1394 = vpop.permute.xlu0 %1393
  %v1396 = vsel %vm214, %v1385, 0
  %v1399 = vsel %vm214, %v1386, 0
  %v1402 = vsel %vm214, %v1387, 0
  %v1405 = vsel %vm214, %v1388, 0
  %v1408 = vsel %vm214, %v1389, 0
  %v1410 = vsel %vm214, %v1392, 0
  %v1412 = vsel %vm214, %v1394, 0
  %1414 = vmatprep.subr.mxu0 0.0
  %1415 = vmatpush1.xpose.msra.mxu0 0.0
  %1416 = vmatprep.subr.mxu0 0.0
  %1417 = vmatpush1.xpose.msra.mxu0 0.0
  %1418 = vmatprep.subr.mxu0 0.0
  %1419 = vmatpush1.xpose.msra.mxu0 0.0
  %1420 = vmatprep.subr.mxu0 0.0
  %1421 = vmatpush1.xpose.msra.mxu0 0.0
  %1422 = vmatprep.subr.mxu0 0.0
  %1423 = vmatpush1.xpose.msra.mxu0 0.0
  %1424 = vmatprep.subr.mxu0 0.0
  %1425 = vmatpush1.xpose.msra.mxu0 0.0
  %1426 = vmatprep.subr.mxu0 0.0
  %1427 = vmatpush1.xpose.msra.mxu0 0.0
  %1428 = vmatprep.subr.mxu0 0.0
  %1429 = vmatpush1.xpose.msra.mxu0 0.0
  %1430 = vmatprep.subr.mxu0 0.0
  %1431 = vmatpush1.xpose.msra.mxu0 0.0
  %1432 = vmatprep.subr.mxu0 0.0
  %1433 = vmatpush1.xpose.msra.mxu0 0.0
  %1434 = vmatprep.subr.mxu0 0.0
  %1435 = vmatpush1.xpose.msra.mxu0 0.0
  %1436 = vmatprep.subr.mxu0 0.0
  %1437 = vmatpush1.xpose.msra.mxu0 0.0
  %1438 = vmatprep.subr.mxu0 0.0
  %1439 = vmatpush1.xpose.msra.mxu0 0.0
  %1440 = vmatprep.subr.mxu0 0.0
  %1441 = vmatpush1.xpose.msra.mxu0 0.0
  %1442 = vmatprep.subr.mxu0 0.0
  %1443 = vmatpush1.xpose.msra.mxu0 %v1412
  %1444 = vmatprep.subr.mxu0 0.0
  %1445 = vmatpush1.xpose.msra.mxu0 %v1410
  %1446 = vmatprep.subr.mxu0 0.0
  %1447 = vmatpush2.xpose.msra.mxu0 0.0
  %1448 = vmatprep.subr.mxu0 0.0
  %1449 = vmatpush2.xpose.msra.mxu0 0.0
  %1450 = vmatprep.subr.mxu0 0.0
  %1451 = vmatpush2.xpose.msra.mxu0 0.0
  %1452 = vmatprep.subr.mxu0 0.0
  %1453 = vmatpush2.xpose.msra.mxu0 0.0
  %1454 = vmatprep.subr.mxu0 0.0
  %1455 = vmatpush2.xpose.msra.mxu0 0.0
  %1456 = vmatprep.subr.mxu0 0.0
  %1457 = vmatpush2.xpose.msra.mxu0 0.0
  %1458 = vmatprep.subr.mxu0 0.0
  %1459 = vmatpush2.xpose.msra.mxu0 0.0
  %1460 = vmatprep.subr.mxu0 0.0
  %1461 = vmatpush2.xpose.msra.mxu0 0.0
  %1462 = vmatprep.subr.mxu0 0.0
  %1463 = vmatpush2.xpose.msra.mxu0 0.0
  %1464 = vmatprep.subr.mxu0 0.0
  %1465 = vmatpush2.xpose.msra.mxu0 0.0
  %1466 = vmatprep.subr.mxu0 0.0
  %1467 = vmatpush2.xpose.msra.mxu0 0.0
  %1468 = vmatprep.subr.mxu0 0.0
  %1469 = vmatpush2.xpose.msra.mxu0 0.0
  %1470 = vmatprep.subr.mxu0 0.0
  %1471 = vmatpush2.xpose.msra.mxu0 0.0
  %1472 = vmatprep.subr.mxu0 0.0
  %1473 = vmatpush2.xpose.msra.mxu0 0.0
  %1474 = vmatprep.subr.mxu0 0.0
  %1475 = vmatpush2.xpose.msra.mxu0 0.0
  %1476 = vmatprep.subr.mxu0 0.0
  %1477 = vmatpush2.xpose.msra.mxu0 0.0
  %1478 = vmatprep.mubr.f32.mxu0 0.0
  %1479 = vmatmul.mubr.f32.gmra.mxu0 %v1396
  %v1480 = vpop.f32.mrf.mxu0
  %v1481 = vadd.f32 %v209, %v1480
  %v1482 = vpop.f32.mrf.mxu0
  %1483 = vmatprep.mubr.f32.mxu0 0.0
  %1484 = vmatmul.mubr.f32.gmra.mxu0 %v1399
  %v1485 = vpop.f32.mrf.mxu0
  %v1486 = vadd.f32 %v210, %v1485
  %v1487 = vpop.f32.mrf.mxu0
  %1488 = vmatprep.mubr.f32.mxu0 0.0
  %1489 = vmatmul.mubr.f32.gmra.mxu0 %v1402
  %v1490 = vpop.f32.mrf.mxu0
  %v1491 = vadd.f32 %v211, %v1490
  %v1492 = vpop.f32.mrf.mxu0
  %1493 = vmatprep.mubr.f32.mxu0 0.0
  %1494 = vmatmul.mubr.f32.gmra.mxu0 %v1405
  %v1495 = vpop.f32.mrf.mxu0
  %v1496 = vadd.f32 %v212, %v1495
  %v1497 = vpop.f32.mrf.mxu0
  %1498 = vmatprep.mubr.f32.mxu0 0.0
  %1499 = vmatmul.mubr.f32.gmra.mxu0 %v1408
  %v1500 = vpop.f32.mrf.mxu0
  %v1501 = vadd.f32 %v213, %v1500
  %v1502 = vpop.f32.mrf.mxu0
  %1503 = vdwg.mxu0
  %v1504 = vsel %vm347, %v1481, -inf
  %1505 = vmax.xlane.f32.xlu0 %v1504
  %v1506 = vpop.xlane.xlu0 %1505
  %v1507 = vsel %vm347, %v1486, -inf
  %1508 = vmax.xlane.f32.xlu0 %v1507
  %v1509 = vpop.xlane.xlu0 %1508
  %v1510 = vsel %vm347, %v1491, -inf
  %1511 = vmax.xlane.f32.xlu0 %v1510
  %v1512 = vpop.xlane.xlu0 %1511
  %v1513 = vsel %vm347, %v1496, -inf
  %1514 = vmax.xlane.f32.xlu0 %v1513
  %v1515 = vpop.xlane.xlu0 %1514
  %v1516 = vsel %vm347, %v1501, -inf
  %1517 = vmax.xlane.f32.xlu0 %v1516
  %v1518 = vpop.xlane.xlu0 %1517
  %v1519 = vsub.f32 %v1481, %v1506
  %v1520 = vsub.f32 %v1486, %v1509
  %v1521 = vsub.f32 %v1491, %v1512
  %v1522 = vsub.f32 %v1496, %v1515
  %v1523 = vsub.f32 %v1501, %v1518
  %v1524 = vmul.f32 %v1519, 1.442695
  %v1525 = vpow.pop %v1524
  %v1526 = vmul.f32 %v1520, 1.442695
  %v1527 = vpow.pop %v1526
  %v1528 = vmul.f32 %v1521, 1.442695
  %v1529 = vpow.pop %v1528
  %v1530 = vmul.f32 %v1522, 1.442695
  %v1531 = vpow.pop %v1530
  %v1532 = vmul.f32 %v1523, 1.442695
  %v1533 = vpow.pop %v1532
  %v1534 = vsel %vm347, %v1525, 0.0
  %1535 = vadd.xlane.f32.xlu0 %v1534
  %v1536 = vpop.xlane.xlu0 %1535
  %v1537 = vsel %vm347, %v1527, 0.0
  %1538 = vadd.xlane.f32.xlu0 %v1537
  %v1539 = vpop.xlane.xlu0 %1538
  %v1540 = vsel %vm347, %v1529, 0.0
  %1541 = vadd.xlane.f32.xlu0 %v1540
  %v1542 = vpop.xlane.xlu0 %1541
  %v1543 = vsel %vm347, %v1531, 0.0
  %1544 = vadd.xlane.f32.xlu0 %v1543
  %v1545 = vpop.xlane.xlu0 %1544
  %v1546 = vsel %vm347, %v1533, 0.0
  %1547 = vadd.xlane.f32.xlu0 %v1546
  %v1548 = vpop.xlane.xlu0 %1547
  %v1549 = vrcp.pop %v1536
  %v1550 = vrcp.pop %v1539
  %v1551 = vrcp.pop %v1542
  %v1552 = vrcp.pop %v1545
  %v1553 = vrcp.pop %v1548
  %v1554 = vmul.f32 %v1525, %v1549
  %v1555 = vmul.f32 %v1527, %v1550
  %v1556 = vmul.f32 %v1529, %v1551
  %v1557 = vmul.f32 %v1531, %v1552
  %v1558 = vmul.f32 %v1533, %v1553
  %1559 = vrot.lane.b32.xlu0 %v1284, 64
  %v1560 = vpop.permute.xlu0 %1559
  %1561 = vrot.lane.b32.xlu0 %v1289, 64
  %v1562 = vpop.permute.xlu0 %1561
  %v1565 = vsel %vm347, %v1554, 0
  %v1568 = vsel %vm347, %v1555, 0
  %v1571 = vsel %vm347, %v1556, 0
  %v1574 = vsel %vm347, %v1557, 0
  %v1577 = vsel %vm347, %v1558, 0
  %v1579 = vsel %vm363, %v1562, 0
  %1581 = vmatprep.subr.mxu0 0.0
  %1582 = vmatpush1.msra.mxu0 0.0
  %1583 = vmatprep.subr.mxu0 0.0
  %1584 = vmatpush1.msra.mxu0 0.0
  %1585 = vmatprep.subr.mxu0 0.0
  %1586 = vmatpush1.msra.mxu0 0.0
  %1587 = vmatprep.subr.mxu0 0.0
  %1588 = vmatpush1.msra.mxu0 0.0
  %1589 = vmatprep.subr.mxu0 0.0
  %1590 = vmatpush1.msra.mxu0 0.0
  %1591 = vmatprep.subr.mxu0 0.0
  %1592 = vmatpush1.msra.mxu0 0.0
  %1593 = vmatprep.subr.mxu0 0.0
  %1594 = vmatpush1.msra.mxu0 0.0
  %1595 = vmatprep.subr.mxu0 0.0
  %1596 = vmatpush1.msra.mxu0 0.0
  %1597 = vmatprep.subr.mxu0 0.0
  %1598 = vmatpush1.msra.mxu0 0.0
  %1599 = vmatprep.subr.mxu0 0.0
  %1600 = vmatpush1.msra.mxu0 0.0
  %1601 = vmatprep.subr.mxu0 0.0
  %1602 = vmatpush1.msra.mxu0 0.0
  %1603 = vmatprep.subr.mxu0 0.0
  %1604 = vmatpush1.msra.mxu0 0.0
  %1605 = vmatprep.subr.mxu0 0.0
  %1606 = vmatpush1.msra.mxu0 0.0
  %1607 = vmatprep.subr.mxu0 0.0
  %1608 = vmatpush1.msra.mxu0 0.0
  %1609 = vmatprep.subr.mxu0 0.0
  %1610 = vmatpush1.msra.mxu0 %v1579
  %1611 = vmatprep.subr.mxu0 0.0
  %1612 = vmatpush1.msra.mxu0 %v1560
  %1613 = vmatprep.subr.mxu0 0.0
  %1614 = vmatpush2.msra.mxu0 0.0
  %1615 = vmatprep.subr.mxu0 0.0
  %1616 = vmatpush2.msra.mxu0 0.0
  %1617 = vmatprep.subr.mxu0 0.0
  %1618 = vmatpush2.msra.mxu0 0.0
  %1619 = vmatprep.subr.mxu0 0.0
  %1620 = vmatpush2.msra.mxu0 0.0
  %1621 = vmatprep.subr.mxu0 0.0
  %1622 = vmatpush2.msra.mxu0 0.0
  %1623 = vmatprep.subr.mxu0 0.0
  %1624 = vmatpush2.msra.mxu0 0.0
  %1625 = vmatprep.subr.mxu0 0.0
  %1626 = vmatpush2.msra.mxu0 0.0
  %1627 = vmatprep.subr.mxu0 0.0
  %1628 = vmatpush2.msra.mxu0 0.0
  %1629 = vmatprep.subr.mxu0 0.0
  %1630 = vmatpush2.msra.mxu0 0.0
  %1631 = vmatprep.subr.mxu0 0.0
  %1632 = vmatpush2.msra.mxu0 0.0
  %1633 = vmatprep.subr.mxu0 0.0
  %1634 = vmatpush2.msra.mxu0 0.0
  %1635 = vmatprep.subr.mxu0 0.0
  %1636 = vmatpush2.msra.mxu0 0.0
  %1637 = vmatprep.subr.mxu0 0.0
  %1638 = vmatpush2.msra.mxu0 0.0
  %1639 = vmatprep.subr.mxu0 0.0
  %1640 = vmatpush2.msra.mxu0 0.0
  %1641 = vmatprep.subr.mxu0 0.0
  %1642 = vmatpush2.msra.mxu0 0.0
  %1643 = vmatprep.subr.mxu0 0.0
  %1644 = vmatpush2.msra.mxu0 0.0
  %1645 = vmatprep.mubr.f32.mxu0 0.0
  %1646 = vmatmul.mubr.f32.gmra.mxu0 %v1565
  %v1647 = vpop.f32.mrf.mxu0
  %v1648 = vadd.f32 0.0, %v1647
  %v1649 = vpop.f32.mrf.mxu0
  %1650 = vmatprep.mubr.f32.mxu0 0.0
  %1651 = vmatmul.mubr.f32.gmra.mxu0 %v1568
  %v1652 = vpop.f32.mrf.mxu0
  %v1653 = vadd.f32 0.0, %v1652
  %v1654 = vpop.f32.mrf.mxu0
  %1655 = vmatprep.mubr.f32.mxu0 0.0
  %1656 = vmatmul.mubr.f32.gmra.mxu0 %v1571
  %v1657 = vpop.f32.mrf.mxu0
  %v1658 = vadd.f32 0.0, %v1657
  %v1659 = vpop.f32.mrf.mxu0
  %1660 = vmatprep.mubr.f32.mxu0 0.0
  %1661 = vmatmul.mubr.f32.gmra.mxu0 %v1574
  %v1662 = vpop.f32.mrf.mxu0
  %v1663 = vadd.f32 0.0, %v1662
  %v1664 = vpop.f32.mrf.mxu0
  %1665 = vmatprep.mubr.f32.mxu0 0.0
  %1666 = vmatmul.mubr.f32.gmra.mxu0 %v1577
  %v1667 = vpop.f32.mrf.mxu0
  %v1668 = vadd.f32 0.0, %v1667
  %v1669 = vpop.f32.mrf.mxu0
  %1670 = vdwg.mxu0
  %v1671 = vmul.f32 %v1648, %v204
  %v1672 = vmul.f32 %v1653, %v205
  %v1673 = vmul.f32 %v1658, %v206
  %v1674 = vmul.f32 %v1663, %v207
  %v1675 = vmul.f32 %v1668, %v208
  %1676 = vmatprep.subr.mxu0 0.0
  %1677 = vmatpush1.msra.mxu0 0.0
  %1678 = vmatprep.subr.mxu0 0.0
  %1679 = vmatpush1.msra.mxu0 0.0
  %1680 = vmatprep.subr.mxu0 0.0
  %1681 = vmatpush1.msra.mxu0 0.0
  %1682 = vmatprep.subr.mxu0 0.0
  %1683 = vmatpush1.msra.mxu0 0.0
  %1684 = vmatprep.subr.mxu0 0.0
  %1685 = vmatpush1.msra.mxu0 0.0
  %1686 = vmatprep.subr.mxu0 0.0
  %1687 = vmatpush1.msra.mxu0 0.0
  %1688 = vmatprep.subr.mxu0 0.0
  %1689 = vmatpush1.msra.mxu0 0.0
  %1690 = vmatprep.subr.mxu0 0.0
  %1691 = vmatpush1.msra.mxu0 0.0
  %1692 = vmatprep.subr.mxu0 0.0
  %1693 = vmatpush1.msra.mxu0 0.0
  %1694 = vmatprep.subr.mxu0 0.0
  %1695 = vmatpush1.msra.mxu0 0.0
  %1696 = vmatprep.subr.mxu0 0.0
  %1697 = vmatpush1.msra.mxu0 0.0
  %1698 = vmatprep.subr.mxu0 0.0
  %1699 = vmatpush1.msra.mxu0 %v1675
  %1700 = vmatprep.subr.mxu0 0.0
  %1701 = vmatpush1.msra.mxu0 %v1674
  %1702 = vmatprep.subr.mxu0 0.0
  %1703 = vmatpush1.msra.mxu0 %v1673
  %1704 = vmatprep.subr.mxu0 0.0
  %1705 = vmatpush1.msra.mxu0 %v1672
  %1706 = vmatprep.subr.mxu0 0.0
  %1707 = vmatpush1.msra.mxu0 %v1671
  %1708 = vmatprep.subr.mxu0 0.0
  %1709 = vmatpush2.msra.mxu0 0.0
  %1710 = vmatprep.subr.mxu0 0.0
  %1711 = vmatpush2.msra.mxu0 0.0
  %1712 = vmatprep.subr.mxu0 0.0
  %1713 = vmatpush2.msra.mxu0 0.0
  %1714 = vmatprep.subr.mxu0 0.0
  %1715 = vmatpush2.msra.mxu0 0.0
  %1716 = vmatprep.subr.mxu0 0.0
  %1717 = vmatpush2.msra.mxu0 0.0
  %1718 = vmatprep.subr.mxu0 0.0
  %1719 = vmatpush2.msra.mxu0 0.0
  %1720 = vmatprep.subr.mxu0 0.0
  %1721 = vmatpush2.msra.mxu0 0.0
  %1722 = vmatprep.subr.mxu0 0.0
  %1723 = vmatpush2.msra.mxu0 0.0
  %1724 = vmatprep.subr.mxu0 0.0
  %1725 = vmatpush2.msra.mxu0 0.0
  %1726 = vmatprep.subr.mxu0 0.0
  %1727 = vmatpush2.msra.mxu0 0.0
  %1728 = vmatprep.subr.mxu0 0.0
  %1729 = vmatpush2.msra.mxu0 0.0
  %1730 = vmatprep.subr.mxu0 0.0
  %1731 = vmatpush2.msra.mxu0 0.0
  %1732 = vmatprep.subr.mxu0 0.0
  %1733 = vmatpush2.msra.mxu0 0.0
  %1734 = vmatprep.subr.mxu0 0.0
  %1735 = vmatpush2.msra.mxu0 0.0
  %1736 = vmatprep.subr.mxu0 0.0
  %1737 = vmatpush2.msra.mxu0 0.0
  %1738 = vmatprep.subr.mxu0 0.0
  %1739 = vmatpush2.msra.mxu0 0.0
  %1740 = vmatprep.mubr.f32.mxu0 0.0
  %1741 = vmatmul.mubr.f32.gmra.mxu0 %v750
  %v1742 = vpop.f32.mrf.mxu0
  %v1743 = vadd.f32 0.0, %v1742
  %v1744 = vpop.f32.mrf.mxu0
  %1745 = vmatprep.mubr.f32.mxu0 0.0
  %1746 = vmatmul.mubr.f32.gmra.mxu0 %v753
  %v1747 = vpop.f32.mrf.mxu0
  %v1748 = vadd.f32 0.0, %v1747
  %v1749 = vpop.f32.mrf.mxu0
  %1750 = vdwg.mxu0
  %v1751 = vld [vmem:[%s1 + $0x1e8] sm:$0xff]
  %v1752 = vld [vmem:[%s1 + $0x1f0] sm:$0xff]
  %v1753 = vld [vmem:[%s1 + $0x1f8] sm:$0xff]
  %v1754 = vld [vmem:[%s1 + $0x200] sm:$0xff]
  %v1756 = vsel %vm214, %v1743, 0
  %v1759 = vsel %vm214, %v1748, 0
  %1761 = vmatprep.subr.mxu0 0.0
  %1762 = vmatpush1.msra.mxu0 0.0
  %1763 = vmatprep.subr.mxu0 0.0
  %1764 = vmatpush1.msra.mxu0 0.0
  %1765 = vmatprep.subr.mxu0 0.0
  %1766 = vmatpush1.msra.mxu0 0.0
  %1767 = vmatprep.subr.mxu0 0.0
  %1768 = vmatpush1.msra.mxu0 0.0
  %1769 = vmatprep.subr.mxu0 0.0
  %1770 = vmatpush1.msra.mxu0 0.0
  %1771 = vmatprep.subr.mxu0 0.0
  %1772 = vmatpush1.msra.mxu0 0.0
  %1773 = vmatprep.subr.mxu0 0.0
  %1774 = vmatpush1.msra.mxu0 0.0
  %1775 = vmatprep.subr.mxu0 0.0
  %1776 = vmatpush1.msra.mxu0 0.0
  %1777 = vmatprep.subr.mxu0 0.0
  %1778 = vmatpush1.msra.mxu0 0.0
  %1779 = vmatprep.subr.mxu0 0.0
  %1780 = vmatpush1.msra.mxu0 0.0
  %1781 = vmatprep.subr.mxu0 0.0
  %1782 = vmatpush1.msra.mxu0 0.0
  %1783 = vmatprep.subr.mxu0 0.0
  %1784 = vmatpush1.msra.mxu0 0.0
  %1785 = vmatprep.subr.mxu0 0.0
  %1786 = vmatpush1.msra.mxu0 %v1754
  %1787 = vmatprep.subr.mxu0 0.0
  %1788 = vmatpush1.msra.mxu0 %v1753
  %1789 = vmatprep.subr.mxu0 0.0
  %1790 = vmatpush1.msra.mxu0 %v1752
  %1791 = vmatprep.subr.mxu0 0.0
  %1792 = vmatpush1.msra.mxu0 %v1751
  %1793 = vmatprep.subr.mxu0 0.0
  %1794 = vmatpush2.msra.mxu0 0.0
  %1795 = vmatprep.subr.mxu0 0.0
  %1796 = vmatpush2.msra.mxu0 0.0
  %1797 = vmatprep.subr.mxu0 0.0
  %1798 = vmatpush2.msra.mxu0 0.0
  %1799 = vmatprep.subr.mxu0 0.0
  %1800 = vmatpush2.msra.mxu0 0.0
  %1801 = vmatprep.subr.mxu0 0.0
  %1802 = vmatpush2.msra.mxu0 0.0
  %1803 = vmatprep.subr.mxu0 0.0
  %1804 = vmatpush2.msra.mxu0 0.0
  %1805 = vmatprep.subr.mxu0 0.0
  %1806 = vmatpush2.msra.mxu0 0.0
  %1807 = vmatprep.subr.mxu0 0.0
  %1808 = vmatpush2.msra.mxu0 0.0
  %1809 = vmatprep.subr.mxu0 0.0
  %1810 = vmatpush2.msra.mxu0 0.0
  %1811 = vmatprep.subr.mxu0 0.0
  %1812 = vmatpush2.msra.mxu0 0.0
  %1813 = vmatprep.subr.mxu0 0.0
  %1814 = vmatpush2.msra.mxu0 0.0
  %1815 = vmatprep.subr.mxu0 0.0
  %1816 = vmatpush2.msra.mxu0 0.0
  %1817 = vmatprep.subr.mxu0 0.0
  %1818 = vmatpush2.msra.mxu0 0.0
  %1819 = vmatprep.subr.mxu0 0.0
  %1820 = vmatpush2.msra.mxu0 0.0
  %1821 = vmatprep.subr.mxu0 0.0
  %1822 = vmatpush2.msra.mxu0 0.0
  %1823 = vmatprep.subr.mxu0 0.0
  %1824 = vmatpush2.msra.mxu0 0.0
  %1825 = vmatprep.mubr.f32.mxu0 0.0
  %1826 = vmatmul.mubr.f32.gmra.mxu0 %v1756
  %v1827 = vpop.f32.mrf.mxu0
  %v1828 = vadd.f32 0.0, %v1827
  %v1829 = vpop.f32.mrf.mxu0
  %1830 = vmatprep.mubr.f32.mxu0 0.0
  %1831 = vmatmul.mubr.f32.gmra.mxu0 %v1759
  %v1832 = vpop.f32.mrf.mxu0
  %v1833 = vadd.f32 0.0, %v1832
  %v1834 = vpop.f32.mrf.mxu0
  %1835 = vdwg.mxu0
  %v1836 = vadd.f32 %v1160, %v1828
  %v1837 = vadd.f32 %v1161, %v1833
  %v1838 = vld [vmem:[%s1 + $0x208] sm:$0x1]
  %v1839 = vlaneseq
  %v1840 = vshrl.u32 %v1839, 7
  %v1841 = vsub.s32 0, %v1840
  %v1842 = vrot.slane %v1838, %v1841
  %v1843 = vadd.f32 %v1836, %v1842
  %v1844 = vadd.f32 %v1837, %v1842
  %v1845 = vsel %vm214, %v1843, 0.0
  %1846 = vadd.xlane.f32.xlu0 %v1845
  %v1847 = vpop.xlane.xlu0 %1846
  %v1848 = vsel %vm218, %v1844, 0.0
  %1849 = vadd.xlane.f32.xlu0 %v1848
  %v1850 = vpop.xlane.xlu0 %1849
  %v1851 = vmul.f32 %v1847, %v222
  %v1852 = vmul.f32 %v1850, %v222
  %v1853 = vsub.f32 %v1843, %v1851
  %v1854 = vsub.f32 %v1844, %v1852
  %v1855 = vmul.f32 %v1853, %v1853
  %v1856 = vmul.f32 %v1854, %v1854
  %v1857 = vsel %vm214, %v1855, 0.0
  %1858 = vadd.xlane.f32.xlu0 %v1857
  %v1859 = vpop.xlane.xlu0 %1858
  %v1860 = vsel %vm218, %v1856, 0.0
  %1861 = vadd.xlane.f32.xlu0 %v1860
  %v1862 = vpop.xlane.xlu0 %1861
  %v1863 = vmul.f32 %v1859, %v222
  %v1864 = vmul.f32 %v1862, %v222
  %v1865 = vadd.f32 %v1863, 1e-12
  %v1866 = vadd.f32 %v1864, 1e-12
  %v1867 = vrsqrt.pop %v1865
  %v1868 = vrsqrt.pop %v1866
  %v1869 = vmul.f32 %v1853, %v1867
  %v1870 = vmul.f32 %v1854, %v1868
  %v1871 = vld [vmem:[%s1 + $0x210] sm:$0x1]
  %v1872 = vlaneseq
  %v1873 = vshrl.u32 %v1872, 7
  %v1874 = vsub.s32 0, %v1873
  %v1875 = vrot.slane %v1871, %v1874
  %v1876 = vmul.f32 %v1869, %v1875
  %v1877 = vmul.f32 %v1870, %v1875
  %v1878 = vld [vmem:[%s1 + $0x218] sm:$0x1]
  %v1879 = vlaneseq
  %v1880 = vshrl.u32 %v1879, 7
  %v1881 = vsub.s32 0, %v1880
  %v1882 = vrot.slane %v1878, %v1881
  %v1883 = vadd.f32 %v1876, %v1882
  %v1884 = vadd.f32 %v1877, %v1882
  %v1885 = vld [vmem:[%s1 + $0x220] sm:$0xff]
  %v1886 = vld [vmem:[%s1 + $0x228] sm:$0xff]
  %v1887 = vld [vmem:[%s1 + $0x230] sm:$0xff]
  %v1888 = vld [vmem:[%s1 + $0x238] sm:$0xff]
  %v1889 = vld [vmem:[%s1 + $0x240] sm:$0x1]
  %v1890 = vlaneseq
  %v1891 = vshrl.u32 %v1890, 7
  %v1892 = vsub.s32 0, %v1891
  %v1893 = vrot.slane %v1889, %v1892
  %v1895 = vsel %vm214, %v1883, 0
  %v1898 = vsel %vm214, %v1884, 0
  %1900 = vmatprep.subr.mxu0 0.0
  %1901 = vmatpush1.msra.mxu0 0.0
  %1902 = vmatprep.subr.mxu0 0.0
  %1903 = vmatpush1.msra.mxu0 0.0
  %1904 = vmatprep.subr.mxu0 0.0
  %1905 = vmatpush1.msra.mxu0 0.0
  %1906 = vmatprep.subr.mxu0 0.0
  %1907 = vmatpush1.msra.mxu0 0.0
  %1908 = vmatprep.subr.mxu0 0.0
  %1909 = vmatpush1.msra.mxu0 0.0
  %1910 = vmatprep.subr.mxu0 0.0
  %1911 = vmatpush1.msra.mxu0 0.0
  %1912 = vmatprep.subr.mxu0 0.0
  %1913 = vmatpush1.msra.mxu0 0.0
  %1914 = vmatprep.subr.mxu0 0.0
  %1915 = vmatpush1.msra.mxu0 0.0
  %1916 = vmatprep.subr.mxu0 0.0
  %1917 = vmatpush1.msra.mxu0 0.0
  %1918 = vmatprep.subr.mxu0 0.0
  %1919 = vmatpush1.msra.mxu0 0.0
  %1920 = vmatprep.subr.mxu0 0.0
  %1921 = vmatpush1.msra.mxu0 0.0
  %1922 = vmatprep.subr.mxu0 0.0
  %1923 = vmatpush1.msra.mxu0 0.0
  %1924 = vmatprep.subr.mxu0 0.0
  %1925 = vmatpush1.msra.mxu0 %v1888
  %1926 = vmatprep.subr.mxu0 0.0
  %1927 = vmatpush1.msra.mxu0 %v1887
  %1928 = vmatprep.subr.mxu0 0.0
  %1929 = vmatpush1.msra.mxu0 %v1886
  %1930 = vmatprep.subr.mxu0 0.0
  %1931 = vmatpush1.msra.mxu0 %v1885
  %1932 = vmatprep.subr.mxu0 0.0
  %1933 = vmatpush2.msra.mxu0 0.0
  %1934 = vmatprep.subr.mxu0 0.0
  %1935 = vmatpush2.msra.mxu0 0.0
  %1936 = vmatprep.subr.mxu0 0.0
  %1937 = vmatpush2.msra.mxu0 0.0
  %1938 = vmatprep.subr.mxu0 0.0
  %1939 = vmatpush2.msra.mxu0 0.0
  %1940 = vmatprep.subr.mxu0 0.0
  %1941 = vmatpush2.msra.mxu0 0.0
  %1942 = vmatprep.subr.mxu0 0.0
  %1943 = vmatpush2.msra.mxu0 0.0
  %1944 = vmatprep.subr.mxu0 0.0
  %1945 = vmatpush2.msra.mxu0 0.0
  %1946 = vmatprep.subr.mxu0 0.0
  %1947 = vmatpush2.msra.mxu0 0.0
  %1948 = vmatprep.subr.mxu0 0.0
  %1949 = vmatpush2.msra.mxu0 0.0
  %1950 = vmatprep.subr.mxu0 0.0
  %1951 = vmatpush2.msra.mxu0 0.0
  %1952 = vmatprep.subr.mxu0 0.0
  %1953 = vmatpush2.msra.mxu0 0.0
  %1954 = vmatprep.subr.mxu0 0.0
  %1955 = vmatpush2.msra.mxu0 0.0
  %1956 = vmatprep.subr.mxu0 0.0
  %1957 = vmatpush2.msra.mxu0 0.0
  %1958 = vmatprep.subr.mxu0 0.0
  %1959 = vmatpush2.msra.mxu0 0.0
  %1960 = vmatprep.subr.mxu0 0.0
  %1961 = vmatpush2.msra.mxu0 0.0
  %1962 = vmatprep.subr.mxu0 0.0
  %1963 = vmatpush2.msra.mxu0 0.0
  %1964 = vmatprep.mubr.f32.mxu0 0.0
  %1965 = vmatmul.mubr.f32.gmra.mxu0 %v1895
  %v1966 = vpop.f32.mrf.mxu0
  %v1967 = vadd.f32 %v1893, %v1966
  %v1968 = vpop.f32.mrf.mxu0
  %1969 = vmatprep.mubr.f32.mxu0 0.0
  %1970 = vmatmul.mubr.f32.gmra.mxu0 %v1898
  %v1971 = vpop.f32.mrf.mxu0
  %v1972 = vadd.f32 %v1893, %v1971
  %v1973 = vpop.f32.mrf.mxu0
  %1974 = vdwg.mxu0
  %v1975 = vmul.f32 %v1967, 0.5
  %v1976 = vmul.f32 %v1972, 0.5
  %v1977 = vmul.f32 %v1967, 0.70710677
  %v1978 = vmul.f32 %v1972, 0.70710677
  %v1979 = verf.f32.pop %v1977
  %v1980 = verf.f32.pop %v1978
  %v1981 = vadd.f32 %v1979, 1.0
  %v1982 = vadd.f32 %v1980, 1.0
  %v1983 = vmul.f32 %v1975, %v1981
  %v1984 = vmul.f32 %v1976, %v1982
  %v1985 = vld [vmem:[%s1 + $0x248] sm:$0xff]
  %v1986 = vld [vmem:[%s1 + $0x250] sm:$0xff]
  %v1987 = vld [vmem:[%s1 + $0x258] sm:$0xff]
  %v1988 = vld [vmem:[%s1 + $0x260] sm:$0xff]
  %v1989 = vld [vmem:[%s1 + $0x268] sm:$0xff]
  %v1990 = vld [vmem:[%s1 + $0x270] sm:$0xff]
  %v1991 = vld [vmem:[%s1 + $0x278] sm:$0xff]
  %v1992 = vld [vmem:[%s1 + $0x280] sm:$0xff]
  %v1994 = vsel %vm37, %v1983, 0
  %v1997 = vsel %vm37, %v1984, 0
  %1999 = vmatprep.subr.mxu0 0.0
  %2000 = vmatpush1.msra.mxu0 0.0
  %2001 = vmatprep.subr.mxu0 0.0
  %2002 = vmatpush1.msra.mxu0 0.0
  %2003 = vmatprep.subr.mxu0 0.0
  %2004 = vmatpush1.msra.mxu0 0.0
  %2005 = vmatprep.subr.mxu0 0.0
  %2006 = vmatpush1.msra.mxu0 0.0
  %2007 = vmatprep.subr.mxu0 0.0
  %2008 = vmatpush1.msra.mxu0 0.0
  %2009 = vmatprep.subr.mxu0 0.0
  %2010 = vmatpush1.msra.mxu0 0.0
  %2011 = vmatprep.subr.mxu0 0.0
  %2012 = vmatpush1.msra.mxu0 0.0
  %2013 = vmatprep.subr.mxu0 0.0
  %2014 = vmatpush1.msra.mxu0 0.0
  %2015 = vmatprep.subr.mxu0 0.0
  %2016 = vmatpush1.msra.mxu0 %v1992
  %2017 = vmatprep.subr.mxu0 0.0
  %2018 = vmatpush1.msra.mxu0 %v1991
  %2019 = vmatprep.subr.mxu0 0.0
  %2020 = vmatpush1.msra.mxu0 %v1990
  %2021 = vmatprep.subr.mxu0 0.0
  %2022 = vmatpush1.msra.mxu0 %v1989
  %2023 = vmatprep.subr.mxu0 0.0
  %2024 = vmatpush1.msra.mxu0 %v1988
  %2025 = vmatprep.subr.mxu0 0.0
  %2026 = vmatpush1.msra.mxu0 %v1987
  %2027 = vmatprep.subr.mxu0 0.0
  %2028 = vmatpush1.msra.mxu0 %v1986
  %2029 = vmatprep.subr.mxu0 0.0
  %2030 = vmatpush1.msra.mxu0 %v1985
  %2031 = vmatprep.subr.mxu0 0.0
  %2032 = vmatpush2.msra.mxu0 0.0
  %2033 = vmatprep.subr.mxu0 0.0
  %2034 = vmatpush2.msra.mxu0 0.0
  %2035 = vmatprep.subr.mxu0 0.0
  %2036 = vmatpush2.msra.mxu0 0.0
  %2037 = vmatprep.subr.mxu0 0.0
  %2038 = vmatpush2.msra.mxu0 0.0
  %2039 = vmatprep.subr.mxu0 0.0
  %2040 = vmatpush2.msra.mxu0 0.0
  %2041 = vmatprep.subr.mxu0 0.0
  %2042 = vmatpush2.msra.mxu0 0.0
  %2043 = vmatprep.subr.mxu0 0.0
  %2044 = vmatpush2.msra.mxu0 0.0
  %2045 = vmatprep.subr.mxu0 0.0
  %2046 = vmatpush2.msra.mxu0 0.0
  %2047 = vmatprep.subr.mxu0 0.0
  %2048 = vmatpush2.msra.mxu0 0.0
  %2049 = vmatprep.subr.mxu0 0.0
  %2050 = vmatpush2.msra.mxu0 0.0
  %2051 = vmatprep.subr.mxu0 0.0
  %2052 = vmatpush2.msra.mxu0 0.0
  %2053 = vmatprep.subr.mxu0 0.0
  %2054 = vmatpush2.msra.mxu0 0.0
  %2055 = vmatprep.subr.mxu0 0.0
  %2056 = vmatpush2.msra.mxu0 0.0
  %2057 = vmatprep.subr.mxu0 0.0
  %2058 = vmatpush2.msra.mxu0 0.0
  %2059 = vmatprep.subr.mxu0 0.0
  %2060 = vmatpush2.msra.mxu0 0.0
  %2061 = vmatprep.subr.mxu0 0.0
  %2062 = vmatpush2.msra.mxu0 0.0
  %2063 = vmatprep.mubr.f32.mxu0 0.0
  %2064 = vmatmul.mubr.f32.gmra.mxu0 %v1994
  %v2065 = vpop.f32.mrf.mxu0
  %v2066 = vadd.f32 0.0, %v2065
  %v2067 = vpop.f32.mrf.mxu0
  %2068 = vmatprep.mubr.f32.mxu0 0.0
  %2069 = vmatmul.mubr.f32.gmra.mxu0 %v1997
  %v2070 = vpop.f32.mrf.mxu0
  %v2071 = vadd.f32 0.0, %v2070
  %v2072 = vpop.f32.mrf.mxu0
  %2073 = vdwg.mxu0
  %v2074 = vadd.f32 %v1843, %v2066
  %v2075 = vadd.f32 %v1844, %v2071
  %v2076 = vld [vmem:[%s1 + $0x288] sm:$0x1]
  %v2077 = vlaneseq
  %v2078 = vshrl.u32 %v2077, 7
  %v2079 = vsub.s32 0, %v2078
  %v2080 = vrot.slane %v2076, %v2079
  %v2081 = vadd.f32 %v2074, %v2080
  %v2082 = vadd.f32 %v2075, %v2080
  %v2083 = vsel %vm214, %v2081, 0.0
  %2084 = vadd.xlane.f32.xlu0 %v2083
  %v2085 = vpop.xlane.xlu0 %2084
  %v2086 = vsel %vm218, %v2082, 0.0
  %2087 = vadd.xlane.f32.xlu0 %v2086
  %v2088 = vpop.xlane.xlu0 %2087
  %v2089 = vmul.f32 %v2085, %v222
  %v2090 = vmul.f32 %v2088, %v222
  %v2091 = vsub.f32 %v2081, %v2089
  %v2092 = vsub.f32 %v2082, %v2090
  %v2093 = vmul.f32 %v2091, %v2091
  %v2094 = vmul.f32 %v2092, %v2092
  %v2095 = vsel %vm214, %v2093, 0.0
  %2096 = vadd.xlane.f32.xlu0 %v2095
  %v2097 = vpop.xlane.xlu0 %2096
  %v2098 = vsel %vm218, %v2094, 0.0
  %2099 = vadd.xlane.f32.xlu0 %v2098
  %v2100 = vpop.xlane.xlu0 %2099
  %v2101 = vmul.f32 %v2097, %v222
  %v2102 = vmul.f32 %v2100, %v222
  %v2103 = vadd.f32 %v2101, 1e-12
  %v2104 = vadd.f32 %v2102, 1e-12
  %v2105 = vrsqrt.pop %v2103
  %v2106 = vrsqrt.pop %v2104
  %v2107 = vmul.f32 %v2091, %v2105
  %v2108 = vmul.f32 %v2092, %v2106
  %v2109 = vld [vmem:[%s1 + $0x290] sm:$0x1]
  %v2110 = vlaneseq
  %v2111 = vshrl.u32 %v2110, 7
  %v2112 = vsub.s32 0, %v2111
  %v2113 = vrot.slane %v2109, %v2112
  %v2114 = vmul.f32 %v2107, %v2113
  %v2115 = vmul.f32 %v2108, %v2113
  %v2116 = vld [vmem:[%s1 + $0x298] sm:$0x1]
  %v2117 = vlaneseq
  %v2118 = vshrl.u32 %v2117, 7
  %v2119 = vsub.s32 0, %v2118
  %v2120 = vrot.slane %v2116, %v2119
  %v2121 = vadd.f32 %v2114, %v2120
  %v2122 = vadd.f32 %v2115, %v2120
  %v2123 = vld [vmem:[%s1 + $0x360] sm:$0xff]
  %v2124 = vld [vmem:[%s1 + $0x368] sm:$0xff]
  %v2126 = vsel %vm347, %v2123, 0
  %v2129 = vsel %vm347, %v2124, 0
  %v2132 = vsel %vm363, %v2122, 0
  %2134 = vmatprep.subr.mxu0 0.0
  %2135 = vmatpush1.msra.mxu0 0.0
  %2136 = vmatprep.subr.mxu0 0.0
  %2137 = vmatpush1.msra.mxu0 0.0
  %2138 = vmatprep.subr.mxu0 0.0
  %2139 = vmatpush1.msra.mxu0 0.0
  %2140 = vmatprep.subr.mxu0 0.0
  %2141 = vmatpush1.msra.mxu0 0.0
  %2142 = vmatprep.subr.mxu0 0.0
  %2143 = vmatpush1.msra.mxu0 0.0
  %2144 = vmatprep.subr.mxu0 0.0
  %2145 = vmatpush1.msra.mxu0 0.0
  %2146 = vmatprep.subr.mxu0 0.0
  %2147 = vmatpush1.msra.mxu0 0.0
  %2148 = vmatprep.subr.mxu0 0.0
  %2149 = vmatpush1.msra.mxu0 0.0
  %2150 = vmatprep.subr.mxu0 0.0
  %2151 = vmatpush1.msra.mxu0 0.0
  %2152 = vmatprep.subr.mxu0 0.0
  %2153 = vmatpush1.msra.mxu0 0.0
  %2154 = vmatprep.subr.mxu0 0.0
  %2155 = vmatpush1.msra.mxu0 0.0
  %2156 = vmatprep.subr.mxu0 0.0
  %2157 = vmatpush1.msra.mxu0 0.0
  %2158 = vmatprep.subr.mxu0 0.0
  %2159 = vmatpush1.msra.mxu0 0.0
  %2160 = vmatprep.subr.mxu0 0.0
  %2161 = vmatpush1.msra.mxu0 0.0
  %2162 = vmatprep.subr.mxu0 0.0
  %2163 = vmatpush1.msra.mxu0 %v2132
  %2164 = vmatprep.subr.mxu0 0.0
  %2165 = vmatpush1.msra.mxu0 %v2121
  %2166 = vmatprep.subr.mxu0 0.0
  %2167 = vmatpush2.msra.mxu0 0.0
  %2168 = vmatprep.subr.mxu0 0.0
  %2169 = vmatpush2.msra.mxu0 0.0
  %2170 = vmatprep.subr.mxu0 0.0
  %2171 = vmatpush2.msra.mxu0 0.0
  %2172 = vmatprep.subr.mxu0 0.0
  %2173 = vmatpush2.msra.mxu0 0.0
  %2174 = vmatprep.subr.mxu0 0.0
  %2175 = vmatpush2.msra.mxu0 0.0
  %2176 = vmatprep.subr.mxu0 0.0
  %2177 = vmatpush2.msra.mxu0 0.0
  %2178 = vmatprep.subr.mxu0 0.0
  %2179 = vmatpush2.msra.mxu0 0.0
  %2180 = vmatprep.subr.mxu0 0.0
  %2181 = vmatpush2.msra.mxu0 0.0
  %2182 = vmatprep.subr.mxu0 0.0
  %2183 = vmatpush2.msra.mxu0 0.0
  %2184 = vmatprep.subr.mxu0 0.0
  %2185 = vmatpush2.msra.mxu0 0.0
  %2186 = vmatprep.subr.mxu0 0.0
  %2187 = vmatpush2.msra.mxu0 0.0
  %2188 = vmatprep.subr.mxu0 0.0
  %2189 = vmatpush2.msra.mxu0 0.0
  %2190 = vmatprep.subr.mxu0 0.0
  %2191 = vmatpush2.msra.mxu0 0.0
  %2192 = vmatprep.subr.mxu0 0.0
  %2193 = vmatpush2.msra.mxu0 0.0
  %2194 = vmatprep.subr.mxu0 0.0
  %2195 = vmatpush2.msra.mxu0 0.0
  %2196 = vmatprep.subr.mxu0 0.0
  %2197 = vmatpush2.msra.mxu0 0.0
  %2198 = vmatprep.mubr.f32.mxu0 0.0
  %2199 = vmatmul.mubr.f32.gmra.mxu0 %v2126
  %v2200 = vpop.f32.mrf.mxu0
  %v2201 = vadd.f32 0.0, %v2200
  %v2202 = vpop.f32.mrf.mxu0
  %2203 = vmatprep.mubr.f32.mxu0 0.0
  %2204 = vmatmul.mubr.f32.gmra.mxu0 %v2129
  %v2205 = vpop.f32.mrf.mxu0
  %v2206 = vadd.f32 0.0, %v2205
  %v2207 = vpop.f32.mrf.mxu0
  %2208 = vdwg.mxu0
  %v2209 = vld [vmem:[%s1 + $0x2a0] sm:$0xff]
  %v2210 = vld [vmem:[%s1 + $0x2a8] sm:$0xff]
  %v2211 = vld [vmem:[%s1 + $0x2b0] sm:$0xff]
  %v2212 = vld [vmem:[%s1 + $0x2b8] sm:$0xff]
  %v2213 = vld [vmem:[%s1 + $0x2c0] sm:$0x1]
  %v2214 = vlaneseq
  %v2215 = vshrl.u32 %v2214, 7
  %v2216 = vsub.s32 0, %v2215
  %v2217 = vrot.slane %v2213, %v2216
  %v2219 = vsel %vm214, %v2206, 0
  %2221 = vmatprep.subr.mxu0 0.0
  %2222 = vmatpush1.msra.mxu0 0.0
  %2223 = vmatprep.subr.mxu0 0.0
  %2224 = vmatpush1.msra.mxu0 0.0
  %2225 = vmatprep.subr.mxu0 0.0
  %2226 = vmatpush1.msra.mxu0 0.0
  %2227 = vmatprep.subr.mxu0 0.0
  %2228 = vmatpush1.msra.mxu0 0.0
  %2229 = vmatprep.subr.mxu0 0.0
  %2230 = vmatpush1.msra.mxu0 0.0
  %2231 = vmatprep.subr.mxu0 0.0
  %2232 = vmatpush1.msra.mxu0 0.0
  %2233 = vmatprep.subr.mxu0 0.0
  %2234 = vmatpush1.msra.mxu0 0.0
  %2235 = vmatprep.subr.mxu0 0.0
  %2236 = vmatpush1.msra.mxu0 0.0
  %2237 = vmatprep.subr.mxu0 0.0
  %2238 = vmatpush1.msra.mxu0 0.0
  %2239 = vmatprep.subr.mxu0 0.0
  %2240 = vmatpush1.msra.mxu0 0.0
  %2241 = vmatprep.subr.mxu0 0.0
  %2242 = vmatpush1.msra.mxu0 0.0
  %2243 = vmatprep.subr.mxu0 0.0
  %2244 = vmatpush1.msra.mxu0 0.0
  %2245 = vmatprep.subr.mxu0 0.0
  %2246 = vmatpush1.msra.mxu0 %v2212
  %2247 = vmatprep.subr.mxu0 0.0
  %2248 = vmatpush1.msra.mxu0 %v2211
  %2249 = vmatprep.subr.mxu0 0.0
  %2250 = vmatpush1.msra.mxu0 %v2210
  %2251 = vmatprep.subr.mxu0 0.0
  %2252 = vmatpush1.msra.mxu0 %v2209
  %2253 = vmatprep.subr.mxu0 0.0
  %2254 = vmatpush2.msra.mxu0 0.0
  %2255 = vmatprep.subr.mxu0 0.0
  %2256 = vmatpush2.msra.mxu0 0.0
  %2257 = vmatprep.subr.mxu0 0.0
  %2258 = vmatpush2.msra.mxu0 0.0
  %2259 = vmatprep.subr.mxu0 0.0
  %2260 = vmatpush2.msra.mxu0 0.0
  %2261 = vmatprep.subr.mxu0 0.0
  %2262 = vmatpush2.msra.mxu0 0.0
  %2263 = vmatprep.subr.mxu0 0.0
  %2264 = vmatpush2.msra.mxu0 0.0
  %2265 = vmatprep.subr.mxu0 0.0
  %2266 = vmatpush2.msra.mxu0 0.0
  %2267 = vmatprep.subr.mxu0 0.0
  %2268 = vmatpush2.msra.mxu0 0.0
  %2269 = vmatprep.subr.mxu0 0.0
  %2270 = vmatpush2.msra.mxu0 0.0
  %2271 = vmatprep.subr.mxu0 0.0
  %2272 = vmatpush2.msra.mxu0 0.0
  %2273 = vmatprep.subr.mxu0 0.0
  %2274 = vmatpush2.msra.mxu0 0.0
  %2275 = vmatprep.subr.mxu0 0.0
  %2276 = vmatpush2.msra.mxu0 0.0
  %2277 = vmatprep.subr.mxu0 0.0
  %2278 = vmatpush2.msra.mxu0 0.0
  %2279 = vmatprep.subr.mxu0 0.0
  %2280 = vmatpush2.msra.mxu0 0.0
  %2281 = vmatprep.subr.mxu0 0.0
  %2282 = vmatpush2.msra.mxu0 0.0
  %2283 = vmatprep.subr.mxu0 0.0
  %2284 = vmatpush2.msra.mxu0 0.0
  %2285 = vmatprep.mubr.f32.mxu0 0.0
  %2286 = vmatmul.mubr.f32.gmra.mxu0 %v2219
  %v2287 = vpop.f32.mrf.mxu0
  %v2288 = vadd.f32 %v2217, %v2287
  %v2289 = vpop.f32.mrf.mxu0
  %2290 = vdwg.mxu0
  %v2291 = vtanh.pop %v2288
  %2292 = vst.msk [vmem:[%s2] sm:$0xff] %vm214, %v2201
  %2293 = vst.msk [vmem:[%s2 + $0x8] sm:$0xff] %vm214, %v2291
  // Predicated region
  $region10: #{forward.1} parent=0 // pred_check
    _
  $region11: #{forward.1} parent=0 // pred_check_branch
    %2295 = sbr.rel (0) target = $region13
  $region12: #{forward.1} parent=0 // pred_region
    _
  $region13: #{forward.1} parent=0 // pred_fallthru
    _
  // Predicated region
  $region14: #{forward.1} parent=0 // pred_check
    _
  $region15: #{forward.1} parent=0 // pred_check_branch
    %2297 = sbr.rel (0) target = $region17
  $region16: #{forward.1} parent=0 // pred_region
    _
  $region17: #{forward.1} parent=0 // pred_fallthru
    _

</llo_original>
